<compile_context>
chip_gen: v7x
topology: tpu7x:2x2x1
jax: 0.10.0
libtpu: 0.0.40
codegen_flags: <defaults>
</compile_context>

<pallas_src>
import functools

import jax
import jax.numpy as jnp
from jax.experimental import pallas as pl
from jax.experimental.pallas import tpu as pltpu

# ---- config (mirrors WherePTConfig defaults) ----
N_EMBED = 128
N_HEAD = 4
HEAD_SIZE = N_EMBED // N_HEAD  # 32
BLOCK_SIZE = 8                 # causal block size (max T)

NEG_BIG = -1e30   # finite "minus infinity" for the causal mask (avoids NaN rows)
PAD_FILL = -1e9   # matches the PyTorch module's padding fill value


def mha_kernel(*refs, n_head, head_size, has_padding):
    # ref order: x, w_qkv, wp, bp, [pad_bias], out, pv_slab(scratch)
    if has_padding:
        x_ref, wqkv_ref, wp_ref, bp_ref, pad_ref, o_ref, slab_ref = refs
    else:
        x_ref, wqkv_ref, wp_ref, bp_ref, o_ref, slab_ref = refs
        pad_ref = None

    # x_ref    : (T, C)   bf16, one sequence
    # wqkv_ref : (C, 3*n_head*H) bf16 fused [Q|K|V] weights, Q columns pre-scaled by C**-0.5
    # wp_ref   : (n_head*H, C)   bf16 output projection weight (transposed: y = h @ wp + b)
    # bp_ref   : (1, C)          f32 output projection bias
    # pad_ref  : (1, T)          f32 additive key-padding bias (-1e9 at padded keys)
    # o_ref    : (T, C)          f32
    # slab_ref : (T, n_head*H)   f32 VMEM scratch holding per-head attention outputs
    T, C = x_ref.shape
    H = head_size
    nhh = n_head * H

    # One fused QKV projection for all heads: bf16 inputs, f32 accumulation.
    qkv = jnp.dot(x_ref[...], wqkv_ref[...],
                  preferred_element_type=jnp.float32)            # (T, 3*nhh) f32

    # Additive mask bias built once (in-kernel, from iota -- no O(M^2) HBM traffic).
    row = jax.lax.broadcasted_iota(jnp.int32, (T, T), 0)
    col = jax.lax.broadcasted_iota(jnp.int32, (T, T), 1)
    bias = jnp.where(row >= col, 0.0, NEG_BIG).astype(jnp.float32)
    if has_padding:
        # Additive -1e9 on padded keys ~= PyTorch's masked_fill(-1e9): both give
        # exactly-zero softmax weight unless a query's entire valid prefix is padded.
        bias = bias + pad_ref[...]                               # (1, T) broadcasts over rows

    for h in range(n_head):
        q = qkv[:, h * H:(h + 1) * H]                            # (T, H), scale pre-folded
        k = qkv[:, nhh + h * H: nhh + (h + 1) * H]               # (T, H)
        v = qkv[:, 2 * nhh + h * H: 2 * nhh + (h + 1) * H]       # (T, H)

        wei = jax.lax.dot_general(
            q, k, dimension_numbers=(((1,), (1,)), ((), ())),
            preferred_element_type=jnp.float32) + bias           # (T, T) f32

        # softmax over keys (f32 throughout)
        m = jnp.max(wei, axis=-1, keepdims=True)
        e = jnp.exp(wei - m)
        s = jnp.sum(e, axis=-1, keepdims=True)
        r = pl.reciprocal(s, approx=True)                        # EUP slot
        r = r * (2.0 - s * r)                                    # one Newton step -> ~f32 exact
        p = e * r
        # TODO(synk): attention-dropout omitted (inference-mode identity).

        pv = jnp.dot(p, v, preferred_element_type=jnp.float32)   # (T, H)
        slab_ref[:, h * H:(h + 1) * H] = pv                      # head h's 32-lane slab

    # Single 128-deep output projection over the concatenated head slab.
    out = jnp.dot(slab_ref[...].astype(jnp.bfloat16), wp_ref[...],
                  preferred_element_type=jnp.float32) + bp_ref[...]
    # TODO(synk): output dropout omitted (inference-mode identity).
    o_ref[...] = out.astype(o_ref.dtype)


def prepare_params(wq, wk, wv, wp_t, bp):
    """One-time parameter fusion (do at init, NOT per forward call).

    wq/wk/wv: (n_head, C, H) f32;  wp_t: (n_head*H, C) f32 (proj.weight.T);  bp: (C,).
    Returns bf16 fused weights with the 1/sqrt(C) score scale folded into Q.
    """
    n_head, C, H = wq.shape
    scale = float(C) ** -0.5   # matches the PyTorch module: C ** (-0.5), C = n_embed

    def pack(w):  # (n_head, C, H) -> (C, n_head*H), head-major columns
        return jnp.transpose(w, (1, 0, 2)).reshape(C, n_head * H)

    w_qkv = jnp.concatenate([pack(wq) * scale, pack(wk), pack(wv)],
                            axis=1).astype(jnp.bfloat16)          # (C, 3*n_head*H)
    return dict(
        w_qkv=w_qkv,
        wp=wp_t.astype(jnp.bfloat16),                             # (n_head*H, C)
        bp=bp.reshape(1, C).astype(jnp.float32),                  # (1, C)
        n_head=n_head,
        head_size=H,
    )


def multi_head_attention(x, params, padding_mask=None):
    """x: (B, T, C) f32; params from prepare_params; padding_mask: (B, T) bool or None."""
    B, T, C = x.shape
    n_head = params["n_head"]
    H = params["head_size"]
    nhh = n_head * H
    has_padding = padding_mask is not None
    out_dtype = x.dtype

    kernel = functools.partial(mha_kernel, n_head=n_head, head_size=H,
                               has_padding=has_padding)

    in_specs = [
        pl.BlockSpec((None, T, C), lambda b: (b, 0, 0)),      # x: one sequence per step
        pl.BlockSpec((C, 3 * nhh), lambda b: (0, 0)),         # fused QKV weight (grid-invariant)
        pl.BlockSpec((nhh, C), lambda b: (0, 0)),             # proj weight
        pl.BlockSpec((1, C), lambda b: (0, 0)),               # proj bias
    ]
    args = [x.astype(jnp.bfloat16), params["w_qkv"], params["wp"], params["bp"]]

    if has_padding:
        pad_bias = jnp.where(padding_mask, jnp.float32(PAD_FILL),
                             jnp.float32(0.0)).reshape(B, 1, T)  # tiny (B,1,T) f32
        in_specs.append(pl.BlockSpec((None, 1, T), lambda b: (b, 0, 0)))
        args.append(pad_bias)

    out = pl.pallas_call(
        kernel,
        out_shape=jax.ShapeDtypeStruct((B, T, C), out_dtype),
        grid_spec=pltpu.PrefetchScalarGridSpec(
            num_scalar_prefetch=0,
            grid=(B,),
            in_specs=in_specs,
            out_specs=pl.BlockSpec((None, T, C), lambda b: (b, 0, 0)),
            scratch_shapes=[pltpu.VMEM((T, nhh), jnp.float32)],   # per-head pv slab
        ),
        compiler_params=pltpu.CompilerParams(
            dimension_semantics=("parallel",)),                   # batch split across TCs
    )(*args)
    return out


def reference(x, wq, wk, wv, wp_t, bp, padding_mask=None):
    """Pure-JAX f32 mirror of the PyTorch module (per-head, masked_fill semantics)."""
    B, T, C = x.shape
    scale = float(C) ** -0.5
    causal = jnp.tril(jnp.ones((T, T), dtype=bool))
    outs = []
    for h in range(wq.shape[0]):
        q = x @ wq[h]
        k = x @ wk[h]
        v = x @ wv[h]
        wei = jnp.einsum("btd,bsd->bts", q, k) * scale
        wei = jnp.where(causal[None], wei, -jnp.inf)
        if padding_mask is not None:
            wei = jnp.where(padding_mask[:, None, :], PAD_FILL, wei)
        wei = jax.nn.softmax(wei, axis=-1)
        outs.append(jnp.einsum("bts,bsd->btd", wei, v))
    cat = jnp.concatenate(outs, axis=-1)
    return cat @ wp_t + bp


if __name__ == "__main__":
    key = jax.random.PRNGKey(0)
    B, T, C = 2, BLOCK_SIZE, N_EMBED

    k_x, k_q, k_k, k_v, k_p, k_b = jax.random.split(key, 6)
    x = jax.random.normal(k_x, (B, T, C), dtype=jnp.float32)

    # deterministic parameter init (scaled normal, roughly matching Linear init scale)
    wq = jax.random.normal(k_q, (N_HEAD, C, HEAD_SIZE), jnp.float32) * (C ** -0.5)
    wk = jax.random.normal(k_k, (N_HEAD, C, HEAD_SIZE), jnp.float32) * (C ** -0.5)
    wv = jax.random.normal(k_v, (N_HEAD, C, HEAD_SIZE), jnp.float32) * (C ** -0.5)
    wp_t = jax.random.normal(k_p, (C, C), jnp.float32) * (C ** -0.5)   # proj.weight.T
    bp = jax.random.normal(k_b, (C,), jnp.float32) * 0.01              # proj.bias

    params = prepare_params(wq, wk, wv, wp_t, bp)   # one-time fusion (init time)

    # padding mask: mask out the last two key positions of batch element 1
    padding_mask = jnp.zeros((B, T), dtype=bool).at[1, -2:].set(True)

    out_pad = multi_head_attention(x, params, padding_mask)
    out_nopad = multi_head_attention(x, params, None)   # exercises the no-padding variant
    jax.block_until_ready((out_pad, out_nopad))

    ref_pad = reference(x, wq, wk, wv, wp_t, bp, padding_mask)
    ref_nopad = reference(x, wq, wk, wv, wp_t, bp, None)

    assert out_pad.shape == (B, T, C) and out_nopad.shape == (B, T, C)
    # tolerance sized for bf16 MXU inputs vs. the all-f32 reference
    assert jnp.allclose(out_pad, ref_pad, atol=5e-2, rtol=5e-2), "mismatch (padding path)"
    assert jnp.allclose(out_nopad, ref_nopad, atol=5e-2, rtol=5e-2), "mismatch (no-padding path)"

    print("KERNEL_OK")
</pallas_src>

<mosaic_0001>
module attributes {stable_mosaic.version = 11 : i64} {
  func.func @mha_kernel(%arg0: i32, %arg1: memref<1x8x128xbf16, #tpu.memory_space<vmem>>, %arg2: memref<128x384xbf16, #tpu.memory_space<vmem>>, %arg3: memref<128x128xbf16, #tpu.memory_space<vmem>>, %arg4: memref<1x128xf32, #tpu.memory_space<vmem>>, %arg5: memref<1x1x8xf32, #tpu.memory_space<vmem>>, %arg6: memref<1x8x128xf32, #tpu.memory_space<vmem>>, %arg7: memref<8x128xf32, #tpu.memory_space<vmem>>) attributes {dimension_semantics = [#tpu.dimension_semantics<parallel>], iteration_bounds = array<i64: 2>, scalar_prefetch = 0 : i64, scratch_operands = 1 : i64, tpu.core_type = #tpu.core_type<tc>, window_params = [{transform_indices = @transform_0, window_bounds = array<i64: 1, 8, 128>}, {pipeline_mode = #tpu.pipeline_mode<synchronous>, transform_indices = @transform_1, window_bounds = array<i64: 128, 384>}, {pipeline_mode = #tpu.pipeline_mode<synchronous>, transform_indices = @transform_2, window_bounds = array<i64: 128, 128>}, {pipeline_mode = #tpu.pipeline_mode<synchronous>, transform_indices = @transform_3, window_bounds = array<i64: 1, 128>}, {transform_indices = @transform_4, window_bounds = array<i64: 1, 1, 8>}, {transform_indices = @transform_5, window_bounds = array<i64: 1, 8, 128>}]} {
    %c0 = arith.constant 0 : index
    %c0_0 = arith.constant 0 : index
    %c0_1 = arith.constant 0 : index
    %0 = vector.load %arg1[%c0, %c0_0, %c0_1] : memref<1x8x128xbf16, #tpu.memory_space<vmem>>, vector<1x8x128xbf16>
    %1 = vector.shape_cast %0 : vector<1x8x128xbf16> to vector<8x128xbf16>
    %c0_2 = arith.constant 0 : index
    %c0_3 = arith.constant 0 : index
    %2 = vector.load %arg2[%c0_2, %c0_3] : memref<128x384xbf16, #tpu.memory_space<vmem>>, vector<128x384xbf16>
    %cst = arith.constant dense<0.000000e+00> : vector<8x384xf32>
    %3 = tpu.matmul %1, %2, %cst {dimension_numbers = #tpu.dot_dimension_numbers<[1], [0], [0], [1], [0, 0, 1, 1], [], []>} : vector<8x128xbf16>, vector<128x384xbf16>, vector<8x384xf32> -> vector<8x384xf32>
    %4 = tpu.iota {dimensions = array<i32: 0>} : vector<8x8xi32>
    %5 = tpu.iota {dimensions = array<i32: 1>} : vector<8x8xi32>
    %6 = arith.cmpi sge, %4, %5 : vector<8x8xi32>
    %cst_4 = arith.constant 0.000000e+00 : f32
    %cst_5 = arith.constant -1.000000e+30 : f32
    %7 = vector.broadcast %cst_4 : f32 to vector<8x8xf32>
    %8 = vector.broadcast %cst_5 : f32 to vector<8x8xf32>
    %9 = arith.select %6, %7, %8 : vector<8x8xi1>, vector<8x8xf32>
    %c0_6 = arith.constant 0 : index
    %c0_7 = arith.constant 0 : index
    %c0_8 = arith.constant 0 : index
    %10 = vector.load %arg5[%c0_6, %c0_7, %c0_8] : memref<1x1x8xf32, #tpu.memory_space<vmem>>, vector<1x1x8xf32>
    %11 = vector.shape_cast %10 : vector<1x1x8xf32> to vector<1x8xf32>
    %12 = vector.broadcast %11 : vector<1x8xf32> to vector<8x8xf32>
    %13 = arith.addf %9, %12 : vector<8x8xf32>
    %14 = vector.extract_strided_slice %3 {offsets = [0, 0], sizes = [8, 32], strides = [1, 1]} : vector<8x384xf32> to vector<8x32xf32>
    %15 = vector.extract_strided_slice %3 {offsets = [0, 128], sizes = [8, 32], strides = [1, 1]} : vector<8x384xf32> to vector<8x32xf32>
    %16 = vector.extract_strided_slice %3 {offsets = [0, 256], sizes = [8, 32], strides = [1, 1]} : vector<8x384xf32> to vector<8x32xf32>
    %cst_9 = arith.constant dense<0.000000e+00> : vector<8x8xf32>
    %17 = tpu.matmul %14, %15, %cst_9 {dimension_numbers = #tpu.dot_dimension_numbers<[1], [1], [0], [0], [0, 0, 1, 0], [], []>} : vector<8x32xf32>, vector<8x32xf32>, vector<8x8xf32> -> vector<8x8xf32>
    %18 = arith.addf %17, %13 : vector<8x8xf32>
    %cst_10 = arith.constant dense<0xFF800000> : vector<8xf32>
    %19 = vector.multi_reduction <maximumf>, %18, %cst_10 [1] : vector<8x8xf32> to vector<8xf32>
    %20 = vector.shape_cast %19 : vector<8xf32> to vector<8x1xf32>
    %21 = vector.broadcast %20 : vector<8x1xf32> to vector<8x8xf32>
    %22 = arith.subf %18, %21 : vector<8x8xf32>
    %23 = math.exp %22 : vector<8x8xf32>
    %cst_11 = arith.constant dense<0.000000e+00> : vector<8xf32>
    %24 = vector.multi_reduction <add>, %23, %cst_11 [1] : vector<8x8xf32> to vector<8xf32>
    %25 = vector.shape_cast %24 : vector<8xf32> to vector<8x1xf32>
    %26 = tpu.reciprocal %25 {approx = true} : vector<8x1xf32> -> vector<8x1xf32>
    %27 = arith.mulf %25, %26 : vector<8x1xf32>
    %cst_12 = arith.constant 2.000000e+00 : f32
    %28 = vector.broadcast %cst_12 : f32 to vector<8x1xf32>
    %29 = arith.subf %28, %27 : vector<8x1xf32>
    %30 = arith.mulf %26, %29 : vector<8x1xf32>
    %31 = vector.broadcast %30 : vector<8x1xf32> to vector<8x8xf32>
    %32 = arith.mulf %23, %31 : vector<8x8xf32>
    %cst_13 = arith.constant dense<0.000000e+00> : vector<8x32xf32>
    %33 = tpu.matmul %32, %16, %cst_13 {dimension_numbers = #tpu.dot_dimension_numbers<[1], [0], [0], [1], [0, 0, 1, 1], [], []>} : vector<8x8xf32>, vector<8x32xf32>, vector<8x32xf32> -> vector<8x32xf32>
    %c0_14 = arith.constant 0 : index
    %c0_15 = arith.constant 0 : index
    %34 = vector.load %arg7[%c0_14, %c0_15] : memref<8x128xf32, #tpu.memory_space<vmem>>, vector<8x32xf32>
    tpu.vector_store %arg7[%c0_14, %c0_15], %33 {strides = array<i32>} : memref<8x128xf32, #tpu.memory_space<vmem>>, vector<8x32xf32>,
    %35 = vector.extract_strided_slice %3 {offsets = [0, 32], sizes = [8, 32], strides = [1, 1]} : vector<8x384xf32> to vector<8x32xf32>
    %36 = vector.extract_strided_slice %3 {offsets = [0, 160], sizes = [8, 32], strides = [1, 1]} : vector<8x384xf32> to vector<8x32xf32>
    %37 = vector.extract_strided_slice %3 {offsets = [0, 288], sizes = [8, 32], strides = [1, 1]} : vector<8x384xf32> to vector<8x32xf32>
    %cst_16 = arith.constant dense<0.000000e+00> : vector<8x8xf32>
    %38 = tpu.matmul %35, %36, %cst_16 {dimension_numbers = #tpu.dot_dimension_numbers<[1], [1], [0], [0], [0, 0, 1, 0], [], []>} : vector<8x32xf32>, vector<8x32xf32>, vector<8x8xf32> -> vector<8x8xf32>
    %39 = arith.addf %38, %13 : vector<8x8xf32>
    %cst_17 = arith.constant dense<0xFF800000> : vector<8xf32>
    %40 = vector.multi_reduction <maximumf>, %39, %cst_17 [1] : vector<8x8xf32> to vector<8xf32>
    %41 = vector.shape_cast %40 : vector<8xf32> to vector<8x1xf32>
    %42 = vector.broadcast %41 : vector<8x1xf32> to vector<8x8xf32>
    %43 = arith.subf %39, %42 : vector<8x8xf32>
    %44 = math.exp %43 : vector<8x8xf32>
    %cst_18 = arith.constant dense<0.000000e+00> : vector<8xf32>
    %45 = vector.multi_reduction <add>, %44, %cst_18 [1] : vector<8x8xf32> to vector<8xf32>
    %46 = vector.shape_cast %45 : vector<8xf32> to vector<8x1xf32>
    %47 = tpu.reciprocal %46 {approx = true} : vector<8x1xf32> -> vector<8x1xf32>
    %48 = arith.mulf %46, %47 : vector<8x1xf32>
    %cst_19 = arith.constant 2.000000e+00 : f32
    %49 = vector.broadcast %cst_19 : f32 to vector<8x1xf32>
    %50 = arith.subf %49, %48 : vector<8x1xf32>
    %51 = arith.mulf %47, %50 : vector<8x1xf32>
    %52 = vector.broadcast %51 : vector<8x1xf32> to vector<8x8xf32>
    %53 = arith.mulf %44, %52 : vector<8x8xf32>
    %cst_20 = arith.constant dense<0.000000e+00> : vector<8x32xf32>
    %54 = tpu.matmul %53, %37, %cst_20 {dimension_numbers = #tpu.dot_dimension_numbers<[1], [0], [0], [1], [0, 0, 1, 1], [], []>} : vector<8x8xf32>, vector<8x32xf32>, vector<8x32xf32> -> vector<8x32xf32>
    %c0_21 = arith.constant 0 : index
    %c32 = arith.constant 32 : index
    %55 = vector.load %arg7[%c0_21, %c32] : memref<8x128xf32, #tpu.memory_space<vmem>>, vector<8x32xf32>
    tpu.vector_store %arg7[%c0_21, %c32], %54 {strides = array<i32>} : memref<8x128xf32, #tpu.memory_space<vmem>>, vector<8x32xf32>,
    %56 = vector.extract_strided_slice %3 {offsets = [0, 64], sizes = [8, 32], strides = [1, 1]} : vector<8x384xf32> to vector<8x32xf32>
    %57 = vector.extract_strided_slice %3 {offsets = [0, 192], sizes = [8, 32], strides = [1, 1]} : vector<8x384xf32> to vector<8x32xf32>
    %58 = vector.extract_strided_slice %3 {offsets = [0, 320], sizes = [8, 32], strides = [1, 1]} : vector<8x384xf32> to vector<8x32xf32>
    %cst_22 = arith.constant dense<0.000000e+00> : vector<8x8xf32>
    %59 = tpu.matmul %56, %57, %cst_22 {dimension_numbers = #tpu.dot_dimension_numbers<[1], [1], [0], [0], [0, 0, 1, 0], [], []>} : vector<8x32xf32>, vector<8x32xf32>, vector<8x8xf32> -> vector<8x8xf32>
    %60 = arith.addf %59, %13 : vector<8x8xf32>
    %cst_23 = arith.constant dense<0xFF800000> : vector<8xf32>
    %61 = vector.multi_reduction <maximumf>, %60, %cst_23 [1] : vector<8x8xf32> to vector<8xf32>
    %62 = vector.shape_cast %61 : vector<8xf32> to vector<8x1xf32>
    %63 = vector.broadcast %62 : vector<8x1xf32> to vector<8x8xf32>
    %64 = arith.subf %60, %63 : vector<8x8xf32>
    %65 = math.exp %64 : vector<8x8xf32>
    %cst_24 = arith.constant dense<0.000000e+00> : vector<8xf32>
    %66 = vector.multi_reduction <add>, %65, %cst_24 [1] : vector<8x8xf32> to vector<8xf32>
    %67 = vector.shape_cast %66 : vector<8xf32> to vector<8x1xf32>
    %68 = tpu.reciprocal %67 {approx = true} : vector<8x1xf32> -> vector<8x1xf32>
    %69 = arith.mulf %67, %68 : vector<8x1xf32>
    %cst_25 = arith.constant 2.000000e+00 : f32
    %70 = vector.broadcast %cst_25 : f32 to vector<8x1xf32>
    %71 = arith.subf %70, %69 : vector<8x1xf32>
    %72 = arith.mulf %68, %71 : vector<8x1xf32>
    %73 = vector.broadcast %72 : vector<8x1xf32> to vector<8x8xf32>
    %74 = arith.mulf %65, %73 : vector<8x8xf32>
    %cst_26 = arith.constant dense<0.000000e+00> : vector<8x32xf32>
    %75 = tpu.matmul %74, %58, %cst_26 {dimension_numbers = #tpu.dot_dimension_numbers<[1], [0], [0], [1], [0, 0, 1, 1], [], []>} : vector<8x8xf32>, vector<8x32xf32>, vector<8x32xf32> -> vector<8x32xf32>
    %c0_27 = arith.constant 0 : index
    %c64 = arith.constant 64 : index
    %76 = vector.load %arg7[%c0_27, %c64] : memref<8x128xf32, #tpu.memory_space<vmem>>, vector<8x32xf32>
    tpu.vector_store %arg7[%c0_27, %c64], %75 {strides = array<i32>} : memref<8x128xf32, #tpu.memory_space<vmem>>, vector<8x32xf32>,
    %77 = vector.extract_strided_slice %3 {offsets = [0, 96], sizes = [8, 32], strides = [1, 1]} : vector<8x384xf32> to vector<8x32xf32>
    %78 = vector.extract_strided_slice %3 {offsets = [0, 224], sizes = [8, 32], strides = [1, 1]} : vector<8x384xf32> to vector<8x32xf32>
    %79 = vector.extract_strided_slice %3 {offsets = [0, 352], sizes = [8, 32], strides = [1, 1]} : vector<8x384xf32> to vector<8x32xf32>
    %cst_28 = arith.constant dense<0.000000e+00> : vector<8x8xf32>
    %80 = tpu.matmul %77, %78, %cst_28 {dimension_numbers = #tpu.dot_dimension_numbers<[1], [1], [0], [0], [0, 0, 1, 0], [], []>} : vector<8x32xf32>, vector<8x32xf32>, vector<8x8xf32> -> vector<8x8xf32>
    %81 = arith.addf %80, %13 : vector<8x8xf32>
    %cst_29 = arith.constant dense<0xFF800000> : vector<8xf32>
    %82 = vector.multi_reduction <maximumf>, %81, %cst_29 [1] : vector<8x8xf32> to vector<8xf32>
    %83 = vector.shape_cast %82 : vector<8xf32> to vector<8x1xf32>
    %84 = vector.broadcast %83 : vector<8x1xf32> to vector<8x8xf32>
    %85 = arith.subf %81, %84 : vector<8x8xf32>
    %86 = math.exp %85 : vector<8x8xf32>
    %cst_30 = arith.constant dense<0.000000e+00> : vector<8xf32>
    %87 = vector.multi_reduction <add>, %86, %cst_30 [1] : vector<8x8xf32> to vector<8xf32>
    %88 = vector.shape_cast %87 : vector<8xf32> to vector<8x1xf32>
    %89 = tpu.reciprocal %88 {approx = true} : vector<8x1xf32> -> vector<8x1xf32>
    %90 = arith.mulf %88, %89 : vector<8x1xf32>
    %cst_31 = arith.constant 2.000000e+00 : f32
    %91 = vector.broadcast %cst_31 : f32 to vector<8x1xf32>
    %92 = arith.subf %91, %90 : vector<8x1xf32>
    %93 = arith.mulf %89, %92 : vector<8x1xf32>
    %94 = vector.broadcast %93 : vector<8x1xf32> to vector<8x8xf32>
    %95 = arith.mulf %86, %94 : vector<8x8xf32>
    %cst_32 = arith.constant dense<0.000000e+00> : vector<8x32xf32>
    %96 = tpu.matmul %95, %79, %cst_32 {dimension_numbers = #tpu.dot_dimension_numbers<[1], [0], [0], [1], [0, 0, 1, 1], [], []>} : vector<8x8xf32>, vector<8x32xf32>, vector<8x32xf32> -> vector<8x32xf32>
    %c0_33 = arith.constant 0 : index
    %c96 = arith.constant 96 : index
    %97 = vector.load %arg7[%c0_33, %c96] : memref<8x128xf32, #tpu.memory_space<vmem>>, vector<8x32xf32>
    tpu.vector_store %arg7[%c0_33, %c96], %96 {strides = array<i32>} : memref<8x128xf32, #tpu.memory_space<vmem>>, vector<8x32xf32>,
    %c0_34 = arith.constant 0 : index
    %c0_35 = arith.constant 0 : index
    %98 = vector.load %arg7[%c0_34, %c0_35] : memref<8x128xf32, #tpu.memory_space<vmem>>, vector<8x128xf32>
    %99 = arith.truncf %98 : vector<8x128xf32> to vector<8x128xbf16>
    %c0_36 = arith.constant 0 : index
    %c0_37 = arith.constant 0 : index
    %100 = vector.load %arg3[%c0_36, %c0_37] : memref<128x128xbf16, #tpu.memory_space<vmem>>, vector<128x128xbf16>
    %cst_38 = arith.constant dense<0.000000e+00> : vector<8x128xf32>
    %101 = tpu.matmul %99, %100, %cst_38 {dimension_numbers = #tpu.dot_dimension_numbers<[1], [0], [0], [1], [0, 0, 1, 1], [], []>} : vector<8x128xbf16>, vector<128x128xbf16>, vector<8x128xf32> -> vector<8x128xf32>
    %c0_39 = arith.constant 0 : index
    %c0_40 = arith.constant 0 : index
    %102 = vector.load %arg4[%c0_39, %c0_40] : memref<1x128xf32, #tpu.memory_space<vmem>>, vector<1x128xf32>
    %103 = vector.broadcast %102 : vector<1x128xf32> to vector<8x128xf32>
    %104 = arith.addf %101, %103 : vector<8x128xf32>
    %c0_41 = arith.constant 0 : index
    %c0_42 = arith.constant 0 : index
    %c0_43 = arith.constant 0 : index
    %105 = vector.load %arg6[%c0_41, %c0_42, %c0_43] : memref<1x8x128xf32, #tpu.memory_space<vmem>>, vector<1x8x128xf32>
    %106 = vector.shape_cast %105 : vector<1x8x128xf32> to vector<8x128xf32>
    %107 = vector.shape_cast %104 : vector<8x128xf32> to vector<1x8x128xf32>
    tpu.vector_store %arg6[%c0_41, %c0_42, %c0_43], %107 {strides = array<i32>} : memref<1x8x128xf32, #tpu.memory_space<vmem>>, vector<1x8x128xf32>,
    return
  }
  func.func @transform_0(%arg0: i32) -> (i32, i32, i32) {
    %c0_i32 = arith.constant 0 : i32
    %c0_i32_0 = arith.constant 0 : i32
    %c0_i32_1 = arith.constant 0 : i32
    return %arg0, %c0_i32, %c0_i32_0 : i32, i32, i32
  }
  func.func @transform_1(%arg0: i32) -> (i32, i32) {
    %c0_i32 = arith.constant 0 : i32
    %c0_i32_0 = arith.constant 0 : i32
    %c0_i32_1 = arith.constant 0 : i32
    return %c0_i32, %c0_i32_0 : i32, i32
  }
  func.func @transform_2(%arg0: i32) -> (i32, i32) {
    %c0_i32 = arith.constant 0 : i32
    %c0_i32_0 = arith.constant 0 : i32
    %c0_i32_1 = arith.constant 0 : i32
    return %c0_i32, %c0_i32_0 : i32, i32
  }
  func.func @transform_3(%arg0: i32) -> (i32, i32) {
    %c0_i32 = arith.constant 0 : i32
    %c0_i32_0 = arith.constant 0 : i32
    %c0_i32_1 = arith.constant 0 : i32
    return %c0_i32, %c0_i32_0 : i32, i32
  }
  func.func @transform_4(%arg0: i32) -> (i32, i32, i32) {
    %c0_i32 = arith.constant 0 : i32
    %c0_i32_0 = arith.constant 0 : i32
    %c0_i32_1 = arith.constant 0 : i32
    return %arg0, %c0_i32, %c0_i32_0 : i32, i32, i32
  }
  func.func @transform_5(%arg0: i32) -> (i32, i32, i32) {
    %c0_i32 = arith.constant 0 : i32
    %c0_i32_0 = arith.constant 0 : i32
    %c0_i32_1 = arith.constant 0 : i32
    return %arg0, %c0_i32, %c0_i32_0 : i32, i32, i32
  }
}

</mosaic_0001>

<llo_original>
// kernel: tpu_custom_call.1
$region0: #{tpu_custom_call.1}
  #allocation0 [shape = 'u32[]', space=smem, size = 0x4, offset = 0x4, fixed_abs, tag = 'smem constant byte address 0x4 - core index']
  #allocation1 [shape = 'u32[144,128]{1,0:T(1,128)}', space=vmem, size = 0x12000, scoped, tag = 'internal scratch']
  #allocation2 [shape = 'f32[8,128]{1,0:T(8,128)}', space=vmem, size = 0x1000, scoped, tag = 'scratch operand']
  %s0 = inlined_call_operand.hbm [shape: bf16[2,8,128], index: 0, kind: input, shape index: {}]
  %s1 = inlined_call_operand.hbm [shape: bf16[128,384], index: 1, kind: input, shape index: {}]
  %s2 = inlined_call_operand.hbm [shape: bf16[128,128], index: 2, kind: input, shape index: {}]
  %s3 = inlined_call_operand.vmem [shape: f32[1,128], index: 3, kind: input, shape index: {}]
  %s4 = inlined_call_operand.vmem [shape: f32[2,1,8], index: 4, kind: input, shape index: {}]
  %s5 = inlined_call_operand.hbm [shape: f32[2,8,128], index: 5, kind: output, shape index: {}]
  %s6 = sld [smem:[#allocation0]]
  $region65: #{tpu_custom_call.1} parent=0
    _
  %s8 = ssub.s32 1, %s6
  %s9 = scalar_select 0, %s8, %s6
  $region1: #{tpu_custom_call.1} parent=0
    #allocation3 [shape = 'u8[4096]{0}', space=vmem, size = 0x1000, scoped, tag = 'input window, operand 0']
    #allocation4 [shape = 's32[2]{0}', space=sflag, size = 0x8, scoped, tag = 'scoped memory for tpu_custom_call.1']
    #allocation5 [shape = 's32[2]{0}', space=sflag, size = 0x8, scoped, tag = 'scoped memory for tpu_custom_call.1']
    #allocation6 [shape = 'u8[98304]{0}', space=vmem, size = 0x18000, scoped, tag = 'input window, operand 1, single buffered']
    #allocation7 [shape = 's32[1]{0}', space=sflag, size = 0x4, scoped, tag = 'scoped memory for tpu_custom_call.1']
    #allocation8 [shape = 'u8[32768]{0}', space=vmem, size = 0x8000, scoped, tag = 'input window, operand 2, single buffered']
    #allocation9 [shape = 'u8[8192]{0}', space=vmem, size = 0x2000, scoped, tag = 'output window, operand 0']
    %10 = vsyncpa [#allocation4], 0
    %s11 = scalar_lea.sflag [#allocation4], 1
    %12 = vsyncpa %s11, 0
    %13 = vsyncpa [#allocation7], 0
    %14 = vsyncpa [#allocation5], 0
    %s15 = scalar_lea.sflag [#allocation5], 1
    %16 = vsyncpa %s15, 0
    loop: start=0, step=1, limit=4
    $region2: #{tpu_custom_call.1} parent=1 // loop_pre_header
      _
    $region3: #{tpu_custom_call.1} parent=1 // loop_header
      %s18 = sphi 0, %s22
      %p19 = scmp.ge.s32.totalorder %s18, 4
      %s28 = sphi 0, %s30
      %s31 = sphi 0, %s28
      %s32 = sphi 0, %s31
      %s48 = sphi 0, %s32
      %s52 = sphi 0, %s52
      %s54 = sphi 0, %s52
      %s55 = sphi 0, %s54
      %s69 = sphi 0, %s55
      %s73 = sphi 0, %s73
      %s75 = sphi 0, %s73
      %s76 = sphi 0, %s75
      %s90 = sphi 0, %s76
      %s94 = sphi 0, %s94
      %s96 = sphi 0, %s94
      %s97 = sphi 0, %s96
      %s111 = sphi 0, %s97
      %s117 = sphi 0, %s119
      %s120 = sphi 0, %s117
      %s121 = sphi 0, %s120
      %s137 = sphi 0, %s121
      %s143 = sphi 0, %s145
      %s146 = sphi 0, %s143
      %s147 = sphi 0, %s146
      %s163 = sphi 0, %s147
    $region4: #{tpu_custom_call.1} parent=1 // loop_header_branch
      %21 = sbr.rel (%p19) target = $region8
    $region5: #{tpu_custom_call.1} parent=1 // loop_body
      %s23 = ssub.s32 %s18, 1
      %s24 = ssub.s32 %s18, 2
      %s25 = sadd.s32 %s18, 1
      %s26 = ssub.s32 %s18, %s25
      %p27 = scmp.eq.s32.totalorder %s26, 0
      %s29 = sadd.s32 %s28, 1
      %s30 = scalar_select %p27, %s28, %s29
      %p33 = pneg %p27
      %p34 = scmp.eq.s32.totalorder %s18, 1
      %p35 = por %p33, %p34
      %p36 = scmp.ne.s32.totalorder %s28, %s31
      %p37 = scmp.eq.s32.totalorder %s18, 0
      %p38 = por %p36, %p37
      %p39 = scmp.ne.s32.totalorder %s28, %s31
      %p40 = scmp.eq.s32.totalorder %s23, 1
      %p41 = por %p39, %p40
      %p42 = scmp.ne.s32.totalorder %s31, %s32
      %p43 = scmp.eq.s32.totalorder %s23, 0
      %p44 = por %p42, %p43
      %p45 = scmp.ne.s32.totalorder %s31, %s32
      %p46 = scmp.eq.s32.totalorder %s24, 1
      %p47 = por %p45, %p46
      %p49 = scmp.ne.s32.totalorder %s32, %s48
      %p50 = scmp.eq.s32.totalorder %s24, 0
      %p51 = por %p49, %p50
      %s53 = sadd.s32 %s52, 1
      %p56 = scmp.eq.s32.totalorder %s18, 1
      %p57 = scmp.ne.s32.totalorder %s52, %s54
      %p58 = scmp.eq.s32.totalorder %s18, 0
      %p59 = por %p57, %p58
      %p60 = scmp.ne.s32.totalorder %s52, %s54
      %p61 = scmp.eq.s32.totalorder %s23, 1
      %p62 = por %p60, %p61
      %p63 = scmp.ne.s32.totalorder %s54, %s55
      %p64 = scmp.eq.s32.totalorder %s23, 0
      %p65 = por %p63, %p64
      %p66 = scmp.ne.s32.totalorder %s54, %s55
      %p67 = scmp.eq.s32.totalorder %s24, 1
      %p68 = por %p66, %p67
      %p70 = scmp.ne.s32.totalorder %s55, %s69
      %p71 = scmp.eq.s32.totalorder %s24, 0
      %p72 = por %p70, %p71
      %s74 = sadd.s32 %s73, 1
      %p77 = scmp.eq.s32.totalorder %s18, 1
      %p78 = scmp.ne.s32.totalorder %s73, %s75
      %p79 = scmp.eq.s32.totalorder %s18, 0
      %p80 = por %p78, %p79
      %p81 = scmp.ne.s32.totalorder %s73, %s75
      %p82 = scmp.eq.s32.totalorder %s23, 1
      %p83 = por %p81, %p82
      %p84 = scmp.ne.s32.totalorder %s75, %s76
      %p85 = scmp.eq.s32.totalorder %s23, 0
      %p86 = por %p84, %p85
      %p87 = scmp.ne.s32.totalorder %s75, %s76
      %p88 = scmp.eq.s32.totalorder %s24, 1
      %p89 = por %p87, %p88
      %p91 = scmp.ne.s32.totalorder %s76, %s90
      %p92 = scmp.eq.s32.totalorder %s24, 0
      %p93 = por %p91, %p92
      %s95 = sadd.s32 %s94, 1
      %p98 = scmp.eq.s32.totalorder %s18, 1
      %p99 = scmp.ne.s32.totalorder %s94, %s96
      %p100 = scmp.eq.s32.totalorder %s18, 0
      %p101 = por %p99, %p100
      %p102 = scmp.ne.s32.totalorder %s94, %s96
      %p103 = scmp.eq.s32.totalorder %s23, 1
      %p104 = por %p102, %p103
      %p105 = scmp.ne.s32.totalorder %s96, %s97
      %p106 = scmp.eq.s32.totalorder %s23, 0
      %p107 = por %p105, %p106
      %p108 = scmp.ne.s32.totalorder %s96, %s97
      %p109 = scmp.eq.s32.totalorder %s24, 1
      %p110 = por %p108, %p109
      %p112 = scmp.ne.s32.totalorder %s97, %s111
      %p113 = scmp.eq.s32.totalorder %s24, 0
      %p114 = por %p112, %p113
      %s115 = ssub.s32 %s18, %s25
      %p116 = scmp.eq.s32.totalorder %s115, 0
      %s118 = sadd.s32 %s117, 1
      %s119 = scalar_select %p116, %s117, %s118
      %p122 = pneg %p116
      %p123 = scmp.eq.s32.totalorder %s18, 1
      %p124 = por %p122, %p123
      %p125 = scmp.ne.s32.totalorder %s117, %s120
      %p126 = scmp.eq.s32.totalorder %s18, 0
      %p127 = por %p125, %p126
      %p128 = scmp.ne.s32.totalorder %s117, %s120
      %p129 = scmp.eq.s32.totalorder %s23, 1
      %p130 = por %p128, %p129
      %p131 = scmp.ne.s32.totalorder %s120, %s121
      %p132 = scmp.eq.s32.totalorder %s23, 0
      %p133 = por %p131, %p132
      %p134 = scmp.ne.s32.totalorder %s120, %s121
      %p135 = scmp.eq.s32.totalorder %s24, 1
      %p136 = por %p134, %p135
      %p138 = scmp.ne.s32.totalorder %s121, %s137
      %p139 = scmp.eq.s32.totalorder %s24, 0
      %p140 = por %p138, %p139
      %s141 = ssub.s32 %s18, %s25
      %p142 = scmp.eq.s32.totalorder %s141, 0
      %s144 = sadd.s32 %s143, 1
      %s145 = scalar_select %p142, %s143, %s144
      %p148 = pneg %p142
      %p149 = scmp.eq.s32.totalorder %s18, 1
      %p150 = por %p148, %p149
      %p151 = scmp.ne.s32.totalorder %s143, %s146
      %p152 = scmp.eq.s32.totalorder %s18, 0
      %p153 = por %p151, %p152
      %p154 = scmp.ne.s32.totalorder %s143, %s146
      %p155 = scmp.eq.s32.totalorder %s23, 1
      %p156 = por %p154, %p155
      %p157 = scmp.ne.s32.totalorder %s146, %s147
      %p158 = scmp.eq.s32.totalorder %s23, 0
      %p159 = por %p157, %p158
      %p160 = scmp.ne.s32.totalorder %s146, %s147
      %p161 = scmp.eq.s32.totalorder %s24, 1
      %p162 = por %p160, %p161
      %p164 = scmp.ne.s32.totalorder %s147, %s163
      %p165 = scmp.eq.s32.totalorder %s24, 0
      %p166 = por %p164, %p165
      %p167 = scmp.le.s32.totalorder 1, %s18
      %p168 = scmp.lt.s32.totalorder %s18, 3
      %p169 = pnand %p167, %p168
      %p170 = pneg %p169
      // Predicated region
      $region9: #{tpu_custom_call.1} parent=5 // pred_check
        _
      $region10: #{tpu_custom_call.1} parent=5 // pred_check_branch
        %172 = sbr.rel (%p169) target = $region12
      $region11: #{tpu_custom_call.1} parent=5 // pred_region
        %s173 = ssub.s32 %s18, 1
        // Predicated region
        $region13: #{tpu_custom_call.1} parent=11 // pred_check
          %p174 = pneg %p65
        $region14: #{tpu_custom_call.1} parent=11 // pred_check_branch
          %176 = sbr.rel (%p174) target = $region16
        $region15: #{tpu_custom_call.1} parent=11 // pred_region
          %s178 = ssub.s32 3072, 3072
          %179 = vsyncadd [#allocation7], %s178
          %s180 = sshll.u32 [#allocation6], 4
          %s181 = int_to_ptr.vmem [resolvable:$true] %s180
          %186 = dma.hbm_to_vmem [thread:$0]  %s1, 3072, %s181, [#allocation7], 192, 192, 12
        $region16: #{tpu_custom_call.1} parent=11 // pred_fallthru
          _
        // Predicated region
        $region17: #{tpu_custom_call.1} parent=11 // pred_check
          %p187 = pneg %p86
        $region18: #{tpu_custom_call.1} parent=11 // pred_check_branch
          %189 = sbr.rel (%p187) target = $region20
        $region19: #{tpu_custom_call.1} parent=11 // pred_region
          %s191 = ssub.s32 1024, 1024
          %192 = vsyncadd [#allocation7], %s191
          %s193 = sshll.u32 [#allocation8], 4
          %s194 = int_to_ptr.vmem [resolvable:$true] %s193
          %199 = dma.hbm_to_vmem [thread:$0]  %s2, 1024, %s194, [#allocation7], 64, 64, 4
        $region20: #{tpu_custom_call.1} parent=11 // pred_fallthru
          _
        // Predicated region
        $region21: #{tpu_custom_call.1} parent=11 // pred_check
          %p200 = pneg %p107
        $region22: #{tpu_custom_call.1} parent=11 // pred_check_branch
          %202 = sbr.rel (%p200) target = $region24
        $region23: #{tpu_custom_call.1} parent=11 // pred_region
          _
        $region24: #{tpu_custom_call.1} parent=11 // pred_fallthru
          _
      $region12: #{tpu_custom_call.1} parent=5 // pred_fallthru
        _
      %p203 = scmp.lt.s32.totalorder %s18, 2
      // Predicated region
      $region25: #{tpu_custom_call.1} parent=5 // pred_check
        %p204 = pneg %p203
      $region26: #{tpu_custom_call.1} parent=5 // pred_check_branch
        %206 = sbr.rel (%p204) target = $region28
      $region27: #{tpu_custom_call.1} parent=5 // pred_region
        // Predicated region
        $region29: #{tpu_custom_call.1} parent=27 // pred_check
          %p207 = pneg %p38
        $region30: #{tpu_custom_call.1} parent=27 // pred_check_branch
          %209 = sbr.rel (%p207) target = $region32
        $region31: #{tpu_custom_call.1} parent=27 // pred_region
          %s210 = sand.u32 %s28, 1
          %s211 = scalar_lea.sflag [#allocation4], %s210
          %s212 = sand.u32 %s28, 1
          %s213 = smul.addr %s212, 4
          %s214 = scalar_lea.vmem [#allocation3], %s213
          %s216 = ssub.s32 64, 64
          %217 = vsyncadd %s211, %s216
          %s218 = smul.addr %s18, 64
          %s219 = scalar_lea.hbm %s0, %s218
          %s221 = sshll.u32 %s214, 4
          %s222 = int_to_ptr.vmem [resolvable:$true] %s221
          %224 = dma.hbm_to_vmem [thread:$0]  %s219, 64, %s222, %s211
        $region32: #{tpu_custom_call.1} parent=27 // pred_fallthru
          _
        // Predicated region
        $region33: #{tpu_custom_call.1} parent=27 // pred_check
          %p225 = pneg %p127
        $region34: #{tpu_custom_call.1} parent=27 // pred_check_branch
          %227 = sbr.rel (%p225) target = $region36
        $region35: #{tpu_custom_call.1} parent=27 // pred_region
          %p228 = scmp.lt.s32.totalorder %s18, 1
          %s229 = scalar_select %p228, %s18, 1
          %s230 = scalar_lea.vmem %s4, %s229
        $region36: #{tpu_custom_call.1} parent=27 // pred_fallthru
          _
      $region28: #{tpu_custom_call.1} parent=5 // pred_fallthru
        _
      %p231 = scmp.le.s32.totalorder 1, %s18
      %p232 = scmp.lt.s32.totalorder %s18, 3
      %p233 = pnand %p231, %p232
      %p234 = pneg %p233
      // Predicated region
      $region37: #{tpu_custom_call.1} parent=5 // pred_check
        _
      $region38: #{tpu_custom_call.1} parent=5 // pred_check_branch
        %236 = sbr.rel (%p233) target = $region40
      $region39: #{tpu_custom_call.1} parent=5 // pred_region
        %s237 = ssub.s32 %s18, 1
        %s238 = sand.u32 %s31, 1
        %s239 = scalar_lea.sflag [#allocation4], %s238
        %s240 = sand.u32 %s31, 1
        %s241 = smul.addr %s240, 4
        %s242 = scalar_lea.vmem [#allocation3], %s241
        // Predicated region
        $region41: #{tpu_custom_call.1} parent=39 // pred_check
          %p243 = pneg %p44
        $region42: #{tpu_custom_call.1} parent=39 // pred_check_branch
          %245 = sbr.rel (%p243) target = $region44
        $region43: #{tpu_custom_call.1} parent=39 // pred_region
          %246 = dma.done %s239, 64
        $region44: #{tpu_custom_call.1} parent=39 // pred_fallthru
          _
        // Predicated region
        $region45: #{tpu_custom_call.1} parent=39 // pred_check
          %p247 = pneg %p65
        $region46: #{tpu_custom_call.1} parent=39 // pred_check_branch
          %249 = sbr.rel (%p247) target = $region48
        $region47: #{tpu_custom_call.1} parent=39 // pred_region
          %250 = dma.done [#allocation7], 3072
        $region48: #{tpu_custom_call.1} parent=39 // pred_fallthru
          _
        // Predicated region
        $region49: #{tpu_custom_call.1} parent=39 // pred_check
          %p251 = pneg %p86
        $region50: #{tpu_custom_call.1} parent=39 // pred_check_branch
          %253 = sbr.rel (%p251) target = $region52
        $region51: #{tpu_custom_call.1} parent=39 // pred_region
          %254 = dma.done [#allocation7], 1024
        $region52: #{tpu_custom_call.1} parent=39 // pred_fallthru
          _
        %s255 = sand.u32 %s31, 1
        %s256 = scalar_lea.sflag [#allocation4], %s255
        %s257 = sand.u32 %s31, 1
        %s258 = smul.addr %s257, 4
        %s259 = scalar_lea.vmem [#allocation3], %s258
        %p260 = pneg %p44
        %p261 = pneg %p41
        %p262 = pneg %p65
        %p263 = pneg %p62
        %p264 = pneg %p86
        %p265 = pneg %p83
        %p266 = pneg %p107
        %p267 = pneg %p104
        %p268 = scmp.lt.s32.totalorder %s23, 1
        %s269 = scalar_select %p268, %s23, 1
        %s270 = scalar_lea.vmem %s4, %s269
        %p271 = pneg %p133
        %p272 = pneg %p130
        %p273 = pneg %p159
        %p274 = pneg %p156
        %s275 = sand.u32 %s146, 1
        %s276 = scalar_lea.sflag [#allocation5], %s275
        %s277 = sand.u32 %s146, 1
        %s278 = smul.addr %s277, 8
        %s279 = scalar_lea.vmem [#allocation9], %s278
        %p280 = scmp.lt.s32.totalorder %s23, 1
        %s281 = scalar_select %p280, %s23, 1
        %s282 = scalar_lea.vmem %s4, %s281
        %v284 = vld [vmem:[%s242] sm:$0xf]
        %v285 = vld [vmem:[#allocation6] sm:$0xff]
        %v286 = vld [vmem:[#allocation6 + $0x8] sm:$0xf]
        %v287 = vld [vmem:[#allocation6 + $0xc] sm:$0xff]
        %v288 = vld [vmem:[#allocation6 + $0x14] sm:$0xf]
        %v289 = vld [vmem:[#allocation6 + $0x18] sm:$0xff]
        %v290 = vld [vmem:[#allocation6 + $0x20] sm:$0xf]
        %v291 = vld [vmem:[#allocation6 + $0x24] sm:$0xff]
        %v292 = vld [vmem:[#allocation6 + $0x2c] sm:$0xf]
        %v293 = vld [vmem:[#allocation6 + $0x30] sm:$0xff]
        %v294 = vld [vmem:[#allocation6 + $0x38] sm:$0xf]
        %v295 = vld [vmem:[#allocation6 + $0x3c] sm:$0xff]
        %v296 = vld [vmem:[#allocation6 + $0x44] sm:$0xf]
        %v297 = vld [vmem:[#allocation6 + $0x48] sm:$0xff]
        %v298 = vld [vmem:[#allocation6 + $0x50] sm:$0xf]
        %v299 = vld [vmem:[#allocation6 + $0x54] sm:$0xff]
        %v300 = vld [vmem:[#allocation6 + $0x5c] sm:$0xf]
        %v301 = vld [vmem:[#allocation6 + $0x60] sm:$0xff]
        %v302 = vld [vmem:[#allocation6 + $0x68] sm:$0xf]
        %v303 = vld [vmem:[#allocation6 + $0x6c] sm:$0xff]
        %v304 = vld [vmem:[#allocation6 + $0x74] sm:$0xf]
        %v305 = vld [vmem:[#allocation6 + $0x78] sm:$0xff]
        %v306 = vld [vmem:[#allocation6 + $0x80] sm:$0xf]
        %v307 = vld [vmem:[#allocation6 + $0x84] sm:$0xff]
        %v308 = vld [vmem:[#allocation6 + $0x8c] sm:$0xf]
        %v309 = vld [vmem:[#allocation6 + $0x90] sm:$0xff]
        %v310 = vld [vmem:[#allocation6 + $0x98] sm:$0xf]
        %v311 = vld [vmem:[#allocation6 + $0x9c] sm:$0xff]
        %v312 = vld [vmem:[#allocation6 + $0xa4] sm:$0xf]
        %v313 = vld [vmem:[#allocation6 + $0xa8] sm:$0xff]
        %v314 = vld [vmem:[#allocation6 + $0xb0] sm:$0xf]
        %v315 = vld [vmem:[#allocation6 + $0xb4] sm:$0xff]
        %v316 = vld [vmem:[#allocation6 + $0xbc] sm:$0xf]
        %v349 = vunpack.c.l.b16 %v285
        %v350 = vunpack.c.h.b16 %v285
        %v351 = vunpack.c.l.b16 %v286
        %v352 = vunpack.c.l.b16 %v287
        %v353 = vunpack.c.h.b16 %v287
        %v354 = vunpack.c.l.b16 %v288
        %v355 = vunpack.c.l.b16 %v289
        %v356 = vunpack.c.h.b16 %v289
        %v357 = vunpack.c.l.b16 %v290
        %v358 = vunpack.c.l.b16 %v291
        %v359 = vunpack.c.h.b16 %v291
        %v360 = vunpack.c.l.b16 %v292
        %v361 = vunpack.c.l.b16 %v293
        %v362 = vunpack.c.h.b16 %v293
        %v363 = vunpack.c.l.b16 %v294
        %v364 = vunpack.c.l.b16 %v295
        %v365 = vunpack.c.h.b16 %v295
        %v366 = vunpack.c.l.b16 %v296
        %v367 = vunpack.c.l.b16 %v297
        %v368 = vunpack.c.h.b16 %v297
        %v369 = vunpack.c.l.b16 %v298
        %v370 = vunpack.c.l.b16 %v299
        %v371 = vunpack.c.h.b16 %v299
        %v372 = vunpack.c.l.b16 %v300
        %v373 = vunpack.c.l.b16 %v301
        %v374 = vunpack.c.h.b16 %v301
        %v375 = vunpack.c.l.b16 %v302
        %v376 = vunpack.c.l.b16 %v303
        %v377 = vunpack.c.h.b16 %v303
        %v378 = vunpack.c.l.b16 %v304
        %v379 = vunpack.c.l.b16 %v305
        %v380 = vunpack.c.h.b16 %v305
        %v381 = vunpack.c.l.b16 %v306
        %v382 = vunpack.c.l.b16 %v307
        %v383 = vunpack.c.h.b16 %v307
        %v384 = vunpack.c.l.b16 %v308
        %v385 = vunpack.c.l.b16 %v309
        %v386 = vunpack.c.h.b16 %v309
        %v387 = vunpack.c.l.b16 %v310
        %v388 = vunpack.c.l.b16 %v311
        %v389 = vunpack.c.h.b16 %v311
        %v390 = vunpack.c.l.b16 %v312
        %v391 = vunpack.c.l.b16 %v313
        %v392 = vunpack.c.h.b16 %v313
        %v393 = vunpack.c.l.b16 %v314
        %v394 = vunpack.c.l.b16 %v315
        %v395 = vunpack.c.h.b16 %v315
        %v396 = vunpack.c.l.b16 %v316
        %v397 = vpack.c.b16 %v352, %v349
        %v398 = vpack.c.b16 %v353, %v350
        %v399 = vpack.c.b16 %v354, %v351
        %v400 = vpack.c.b16 %v358, %v355
        %v401 = vpack.c.b16 %v359, %v356
        %v402 = vpack.c.b16 %v360, %v357
        %v403 = vpack.c.b16 %v364, %v361
        %v404 = vpack.c.b16 %v365, %v362
        %v405 = vpack.c.b16 %v366, %v363
        %v406 = vpack.c.b16 %v370, %v367
        %v407 = vpack.c.b16 %v371, %v368
        %v408 = vpack.c.b16 %v372, %v369
        %v409 = vpack.c.b16 %v376, %v373
        %v410 = vpack.c.b16 %v377, %v374
        %v411 = vpack.c.b16 %v378, %v375
        %v412 = vpack.c.b16 %v382, %v379
        %v413 = vpack.c.b16 %v383, %v380
        %v414 = vpack.c.b16 %v384, %v381
        %v415 = vpack.c.b16 %v388, %v385
        %v416 = vpack.c.b16 %v389, %v386
        %v417 = vpack.c.b16 %v390, %v387
        %v418 = vpack.c.b16 %v394, %v391
        %v419 = vpack.c.b16 %v395, %v392
        %v420 = vpack.c.b16 %v396, %v393
        %445 = vmatprep.subr.bf16.mxu0 %v398
        %446 = vmatpush1.bf16.msra.mxu0 %v397
        %447 = vmatprep.subr.bf16.mxu0 %v401
        %448 = vmatpush1.bf16.msra.mxu0 %v400
        %449 = vmatprep.subr.bf16.mxu0 %v404
        %450 = vmatpush1.bf16.msra.mxu0 %v403
        %451 = vmatprep.subr.bf16.mxu0 %v407
        %452 = vmatpush1.bf16.msra.mxu0 %v406
        %453 = vmatprep.subr.bf16.mxu0 %v410
        %454 = vmatpush1.bf16.msra.mxu0 %v409
        %455 = vmatprep.subr.bf16.mxu0 %v413
        %456 = vmatpush1.bf16.msra.mxu0 %v412
        %457 = vmatprep.subr.bf16.mxu0 %v416
        %458 = vmatpush1.bf16.msra.mxu0 %v415
        %459 = vmatprep.subr.bf16.mxu0 %v419
        %460 = vmatpush1.bf16.msra.mxu0 %v418
        %461 = vmatprep.subr.bf16.mxu0 0
        %462 = vmatpush1.bf16.msra.mxu0 0
        %463 = vmatprep.subr.bf16.mxu0 0
        %464 = vmatpush1.bf16.msra.mxu0 0
        %465 = vmatprep.subr.bf16.mxu0 0
        %466 = vmatpush1.bf16.msra.mxu0 0
        %467 = vmatprep.subr.bf16.mxu0 0
        %468 = vmatpush1.bf16.msra.mxu0 0
        %469 = vmatprep.subr.bf16.mxu0 0
        %470 = vmatpush1.bf16.msra.mxu0 0
        %471 = vmatprep.subr.bf16.mxu0 0
        %472 = vmatpush1.bf16.msra.mxu0 0
        %473 = vmatprep.subr.bf16.mxu0 0
        %474 = vmatpush1.bf16.msra.mxu0 0
        %475 = vmatprep.subr.bf16.mxu0 0
        %476 = vmatpush1.bf16.msra.mxu0 0
        %477 = vmatprep.mubr.bf16.mxu0 0
        %478 = vmatmul.mubr.bf16.gmra.mrb[0].mxu0 %v284
        %v479 = vpop.f32.mrb[0].mxu0
        %v480 = vadd.f32 0.0, %v479
        %v481 = vpop.f32.mrb[0].mxu0
        %v482 = vadd.f32 0.0, %v481
        %v483 = vpop.f32.mrb[0].mxu0
        %v484 = vpop.f32.mrb[0].mxu0
        %485 = vdwg.mxu0
        %486 = vmatprep.subr.bf16.mxu0 0
        %487 = vmatpush1.bf16.msra.mxu0 %v399
        %488 = vmatprep.subr.bf16.mxu0 0
        %489 = vmatpush1.bf16.msra.mxu0 %v402
        %490 = vmatprep.subr.bf16.mxu0 0
        %491 = vmatpush1.bf16.msra.mxu0 %v405
        %492 = vmatprep.subr.bf16.mxu0 0
        %493 = vmatpush1.bf16.msra.mxu0 %v408
        %494 = vmatprep.subr.bf16.mxu0 0
        %495 = vmatpush1.bf16.msra.mxu0 %v411
        %496 = vmatprep.subr.bf16.mxu0 0
        %497 = vmatpush1.bf16.msra.mxu0 %v414
        %498 = vmatprep.subr.bf16.mxu0 0
        %499 = vmatpush1.bf16.msra.mxu0 %v417
        %500 = vmatprep.subr.bf16.mxu0 0
        %501 = vmatpush1.bf16.msra.mxu0 %v420
        %502 = vmatprep.subr.bf16.mxu0 0
        %503 = vmatpush1.bf16.msra.mxu0 0
        %504 = vmatprep.subr.bf16.mxu0 0
        %505 = vmatpush1.bf16.msra.mxu0 0
        %506 = vmatprep.subr.bf16.mxu0 0
        %507 = vmatpush1.bf16.msra.mxu0 0
        %508 = vmatprep.subr.bf16.mxu0 0
        %509 = vmatpush1.bf16.msra.mxu0 0
        %510 = vmatprep.subr.bf16.mxu0 0
        %511 = vmatpush1.bf16.msra.mxu0 0
        %512 = vmatprep.subr.bf16.mxu0 0
        %513 = vmatpush1.bf16.msra.mxu0 0
        %514 = vmatprep.subr.bf16.mxu0 0
        %515 = vmatpush1.bf16.msra.mxu0 0
        %516 = vmatprep.subr.bf16.mxu0 0
        %517 = vmatpush1.bf16.msra.mxu0 0
        %518 = vmatprep.mubr.bf16.mxu0 0
        %519 = vmatmul.mubr.bf16.gmra.mrb[0].mxu0 %v284
        %v520 = vpop.f32.mrb[0].mxu0
        %v521 = vadd.f32 0.0, %v520
        %v522 = vpop.f32.mrb[0].mxu0
        %v523 = vpop.f32.mrb[0].mxu0
        %v524 = vpop.f32.mrb[0].mxu0
        %525 = vdwg.mxu0
        %v526 = vlaneseq
        %v527 = vshrl.u32 %v526, 7
        %v528 = vlaneseq
        %v529 = vand.u32 %v528, 127
        %vm530 = vcmp.ge.s32.totalorder %v527, %v529
        %v531 = vsel %vm530, 0.0, -1e+30
        %v532 = vld [vmem:[%s282] sm:$0x1]
        %v534 = vlaneseq
        %v535 = vshrl.u32 %v534, 7
        %v536 = vsub.s32 0, %v535
        %v537 = vrot.slane %v532, %v536
        %v539 = vadd.f32 %v531, %v537
        %vm540 = vcmask 261120
        %v542 = vsel %vm540, %v480, 0
        %v545 = vsel %vm540, %v482, 0
        %547 = vmatprep.subr.mxu0 0.0
        %548 = vmatpush1.xpose.msra.mxu0 %v545
        %549 = vmatprep.subr.mxu0 0.0
        %550 = vmatpush1.xpose.msra.mxu0 0.0
        %551 = vmatprep.subr.mxu0 0.0
        %552 = vmatpush1.xpose.msra.mxu0 0.0
        %553 = vmatprep.subr.mxu0 0.0
        %554 = vmatpush1.xpose.msra.mxu0 0.0
        %555 = vmatprep.subr.mxu0 0.0
        %556 = vmatpush1.xpose.msra.mxu0 0.0
        %557 = vmatprep.subr.mxu0 0.0
        %558 = vmatpush1.xpose.msra.mxu0 0.0
        %559 = vmatprep.subr.mxu0 0.0
        %560 = vmatpush1.xpose.msra.mxu0 0.0
        %561 = vmatprep.subr.mxu0 0.0
        %562 = vmatpush1.xpose.msra.mxu0 0.0
        %563 = vmatprep.subr.mxu0 0.0
        %564 = vmatpush1.xpose.msra.mxu0 0.0
        %565 = vmatprep.subr.mxu0 0.0
        %566 = vmatpush1.xpose.msra.mxu0 0.0
        %567 = vmatprep.subr.mxu0 0.0
        %568 = vmatpush1.xpose.msra.mxu0 0.0
        %569 = vmatprep.subr.mxu0 0.0
        %570 = vmatpush1.xpose.msra.mxu0 0.0
        %571 = vmatprep.subr.mxu0 0.0
        %572 = vmatpush1.xpose.msra.mxu0 0.0
        %573 = vmatprep.subr.mxu0 0.0
        %574 = vmatpush1.xpose.msra.mxu0 0.0
        %575 = vmatprep.subr.mxu0 0.0
        %576 = vmatpush1.xpose.msra.mxu0 0.0
        %577 = vmatprep.subr.mxu0 0.0
        %578 = vmatpush1.xpose.msra.mxu0 0.0
        %579 = vmatprep.subr.mxu0 0.0
        %580 = vmatpush1.xpose.msra.mxu0 0.0
        %581 = vmatprep.subr.mxu0 0.0
        %582 = vmatpush1.xpose.msra.mxu0 0.0
        %583 = vmatprep.subr.mxu0 0.0
        %584 = vmatpush1.xpose.msra.mxu0 0.0
        %585 = vmatprep.subr.mxu0 0.0
        %586 = vmatpush1.xpose.msra.mxu0 0.0
        %587 = vmatprep.subr.mxu0 0.0
        %588 = vmatpush1.xpose.msra.mxu0 0.0
        %589 = vmatprep.subr.mxu0 0.0
        %590 = vmatpush1.xpose.msra.mxu0 0.0
        %591 = vmatprep.subr.mxu0 0.0
        %592 = vmatpush1.xpose.msra.mxu0 0.0
        %593 = vmatprep.subr.mxu0 0.0
        %594 = vmatpush1.xpose.msra.mxu0 0.0
        %595 = vmatprep.subr.mxu0 0.0
        %596 = vmatpush1.xpose.msra.mxu0 0.0
        %597 = vmatprep.subr.mxu0 0.0
        %598 = vmatpush1.xpose.msra.mxu0 0.0
        %599 = vmatprep.subr.mxu0 0.0
        %600 = vmatpush1.xpose.msra.mxu0 0.0
        %601 = vmatprep.subr.mxu0 0.0
        %602 = vmatpush1.xpose.msra.mxu0 0.0
        %603 = vmatprep.subr.mxu0 0.0
        %604 = vmatpush1.xpose.msra.mxu0 0.0
        %605 = vmatprep.subr.mxu0 0.0
        %606 = vmatpush1.xpose.msra.mxu0 0.0
        %607 = vmatprep.subr.mxu0 0.0
        %608 = vmatpush1.xpose.msra.mxu0 0.0
        %609 = vmatprep.subr.mxu0 0.0
        %610 = vmatpush1.xpose.msra.mxu0 0.0
        %611 = vmatprep.mubr.f32.mxu0 0.0
        %612 = vmatmul.mubr.f32.gmra.mrb[0].mxu0 %v542
        %v613 = vpop.f32.mrb[0].mxu0
        %v614 = vadd.f32 %v539, %v613
        %v615 = vpop.f32.mrb[0].mxu0
        %616 = vdwg.mxu0
        %vm617 = vcmask 64512
        %v618 = vsel %vm617, %v614, -inf
        %619 = vmax.xlane.f32.xlu0 %v618
        %v620 = vpop.xlane.xlu0 %619
        %v621 = vsub.f32 %v614, %v620
        %v622 = vmul.f32 %v621, 1.442695
        %v623 = vpow.pop %v622
        %v624 = vsel %vm617, %v623, 0.0
        %625 = vadd.xlane.f32.xlu0 %v624
        %v626 = vpop.xlane.xlu0 %625
        %v627 = vrcp.pop %v626
        %v628 = vmul.f32 %v626, %v627
        %v629 = vsub.f32 2.0, %v628
        %v630 = vmul.f32 %v627, %v629
        %v631 = vmul.f32 %v623, %v630
        %v633 = vsel %vm617, %v631, 0
        %635 = vmatprep.subr.mxu0 0.0
        %636 = vmatpush1.msra.mxu0 %v521
        %637 = vmatprep.subr.mxu0 0.0
        %638 = vmatpush1.msra.mxu0 0.0
        %639 = vmatprep.subr.mxu0 0.0
        %640 = vmatpush1.msra.mxu0 0.0
        %641 = vmatprep.subr.mxu0 0.0
        %642 = vmatpush1.msra.mxu0 0.0
        %643 = vmatprep.subr.mxu0 0.0
        %644 = vmatpush1.msra.mxu0 0.0
        %645 = vmatprep.subr.mxu0 0.0
        %646 = vmatpush1.msra.mxu0 0.0
        %647 = vmatprep.subr.mxu0 0.0
        %648 = vmatpush1.msra.mxu0 0.0
        %649 = vmatprep.subr.mxu0 0.0
        %650 = vmatpush1.msra.mxu0 0.0
        %651 = vmatprep.subr.mxu0 0.0
        %652 = vmatpush1.msra.mxu0 0.0
        %653 = vmatprep.subr.mxu0 0.0
        %654 = vmatpush1.msra.mxu0 0.0
        %655 = vmatprep.subr.mxu0 0.0
        %656 = vmatpush1.msra.mxu0 0.0
        %657 = vmatprep.subr.mxu0 0.0
        %658 = vmatpush1.msra.mxu0 0.0
        %659 = vmatprep.subr.mxu0 0.0
        %660 = vmatpush1.msra.mxu0 0.0
        %661 = vmatprep.subr.mxu0 0.0
        %662 = vmatpush1.msra.mxu0 0.0
        %663 = vmatprep.subr.mxu0 0.0
        %664 = vmatpush1.msra.mxu0 0.0
        %665 = vmatprep.subr.mxu0 0.0
        %666 = vmatpush1.msra.mxu0 0.0
        %667 = vmatprep.subr.mxu0 0.0
        %668 = vmatpush1.msra.mxu0 0.0
        %669 = vmatprep.subr.mxu0 0.0
        %670 = vmatpush1.msra.mxu0 0.0
        %671 = vmatprep.subr.mxu0 0.0
        %672 = vmatpush1.msra.mxu0 0.0
        %673 = vmatprep.subr.mxu0 0.0
        %674 = vmatpush1.msra.mxu0 0.0
        %675 = vmatprep.subr.mxu0 0.0
        %676 = vmatpush1.msra.mxu0 0.0
        %677 = vmatprep.subr.mxu0 0.0
        %678 = vmatpush1.msra.mxu0 0.0
        %679 = vmatprep.subr.mxu0 0.0
        %680 = vmatpush1.msra.mxu0 0.0
        %681 = vmatprep.subr.mxu0 0.0
        %682 = vmatpush1.msra.mxu0 0.0
        %683 = vmatprep.subr.mxu0 0.0
        %684 = vmatpush1.msra.mxu0 0.0
        %685 = vmatprep.subr.mxu0 0.0
        %686 = vmatpush1.msra.mxu0 0.0
        %687 = vmatprep.subr.mxu0 0.0
        %688 = vmatpush1.msra.mxu0 0.0
        %689 = vmatprep.subr.mxu0 0.0
        %690 = vmatpush1.msra.mxu0 0.0
        %691 = vmatprep.subr.mxu0 0.0
        %692 = vmatpush1.msra.mxu0 0.0
        %693 = vmatprep.subr.mxu0 0.0
        %694 = vmatpush1.msra.mxu0 0.0
        %695 = vmatprep.subr.mxu0 0.0
        %696 = vmatpush1.msra.mxu0 0.0
        %697 = vmatprep.subr.mxu0 0.0
        %698 = vmatpush1.msra.mxu0 0.0
        %699 = vmatprep.mubr.f32.mxu0 0.0
        %700 = vmatmul.mubr.f32.gmra.mrb[0].mxu0 %v633
        %v701 = vpop.f32.mrb[0].mxu0
        %v702 = vadd.f32 0.0, %v701
        %v703 = vpop.f32.mrb[0].mxu0
        %704 = vdwg.mxu0
        %705 = vst.msk [vmem:[#allocation2] sm:$0xff] %vm540, %v702
        %706 = vrot.lane.b32.xlu0 %v480, 96
        %v707 = vpop.permute.xlu0 %706
        %708 = vrot.lane.b32.xlu0 %v482, 96
        %v709 = vpop.permute.xlu0 %708
        %v710 = vsel %vm540, %v707, 0
        %v712 = vsel %vm540, %v709, 0
        %714 = vmatprep.subr.mxu0 0.0
        %715 = vmatpush1.xpose.msra.mxu0 %v712
        %716 = vmatprep.subr.mxu0 0.0
        %717 = vmatpush1.xpose.msra.mxu0 0.0
        %718 = vmatprep.subr.mxu0 0.0
        %719 = vmatpush1.xpose.msra.mxu0 0.0
        %720 = vmatprep.subr.mxu0 0.0
        %721 = vmatpush1.xpose.msra.mxu0 0.0
        %722 = vmatprep.subr.mxu0 0.0
        %723 = vmatpush1.xpose.msra.mxu0 0.0
        %724 = vmatprep.subr.mxu0 0.0
        %725 = vmatpush1.xpose.msra.mxu0 0.0
        %726 = vmatprep.subr.mxu0 0.0
        %727 = vmatpush1.xpose.msra.mxu0 0.0
        %728 = vmatprep.subr.mxu0 0.0
        %729 = vmatpush1.xpose.msra.mxu0 0.0
        %730 = vmatprep.subr.mxu0 0.0
        %731 = vmatpush1.xpose.msra.mxu0 0.0
        %732 = vmatprep.subr.mxu0 0.0
        %733 = vmatpush1.xpose.msra.mxu0 0.0
        %734 = vmatprep.subr.mxu0 0.0
        %735 = vmatpush1.xpose.msra.mxu0 0.0
        %736 = vmatprep.subr.mxu0 0.0
        %737 = vmatpush1.xpose.msra.mxu0 0.0
        %738 = vmatprep.subr.mxu0 0.0
        %739 = vmatpush1.xpose.msra.mxu0 0.0
        %740 = vmatprep.subr.mxu0 0.0
        %741 = vmatpush1.xpose.msra.mxu0 0.0
        %742 = vmatprep.subr.mxu0 0.0
        %743 = vmatpush1.xpose.msra.mxu0 0.0
        %744 = vmatprep.subr.mxu0 0.0
        %745 = vmatpush1.xpose.msra.mxu0 0.0
        %746 = vmatprep.subr.mxu0 0.0
        %747 = vmatpush1.xpose.msra.mxu0 0.0
        %748 = vmatprep.subr.mxu0 0.0
        %749 = vmatpush1.xpose.msra.mxu0 0.0
        %750 = vmatprep.subr.mxu0 0.0
        %751 = vmatpush1.xpose.msra.mxu0 0.0
        %752 = vmatprep.subr.mxu0 0.0
        %753 = vmatpush1.xpose.msra.mxu0 0.0
        %754 = vmatprep.subr.mxu0 0.0
        %755 = vmatpush1.xpose.msra.mxu0 0.0
        %756 = vmatprep.subr.mxu0 0.0
        %757 = vmatpush1.xpose.msra.mxu0 0.0
        %758 = vmatprep.subr.mxu0 0.0
        %759 = vmatpush1.xpose.msra.mxu0 0.0
        %760 = vmatprep.subr.mxu0 0.0
        %761 = vmatpush1.xpose.msra.mxu0 0.0
        %762 = vmatprep.subr.mxu0 0.0
        %763 = vmatpush1.xpose.msra.mxu0 0.0
        %764 = vmatprep.subr.mxu0 0.0
        %765 = vmatpush1.xpose.msra.mxu0 0.0
        %766 = vmatprep.subr.mxu0 0.0
        %767 = vmatpush1.xpose.msra.mxu0 0.0
        %768 = vmatprep.subr.mxu0 0.0
        %769 = vmatpush1.xpose.msra.mxu0 0.0
        %770 = vmatprep.subr.mxu0 0.0
        %771 = vmatpush1.xpose.msra.mxu0 0.0
        %772 = vmatprep.subr.mxu0 0.0
        %773 = vmatpush1.xpose.msra.mxu0 0.0
        %774 = vmatprep.subr.mxu0 0.0
        %775 = vmatpush1.xpose.msra.mxu0 0.0
        %776 = vmatprep.subr.mxu0 0.0
        %777 = vmatpush1.xpose.msra.mxu0 0.0
        %778 = vmatprep.mubr.f32.mxu0 0.0
        %779 = vmatmul.mubr.f32.gmra.mrb[0].mxu0 %v710
        %v780 = vpop.f32.mrb[0].mxu0
        %v781 = vadd.f32 %v539, %v780
        %v782 = vpop.f32.mrb[0].mxu0
        %783 = vdwg.mxu0
        %v784 = vsel %vm617, %v781, -inf
        %785 = vmax.xlane.f32.xlu0 %v784
        %v786 = vpop.xlane.xlu0 %785
        %v787 = vsub.f32 %v781, %v786
        %v788 = vmul.f32 %v787, 1.442695
        %v789 = vpow.pop %v788
        %v790 = vsel %vm617, %v789, 0.0
        %791 = vadd.xlane.f32.xlu0 %v790
        %v792 = vpop.xlane.xlu0 %791
        %v793 = vrcp.pop %v792
        %v794 = vmul.f32 %v792, %v793
        %v795 = vsub.f32 2.0, %v794
        %v796 = vmul.f32 %v793, %v795
        %v797 = vmul.f32 %v789, %v796
        %799 = vrot.lane.b32.xlu0 %v521, 96
        %v800 = vpop.permute.xlu0 %799
        %v803 = vsel %vm617, %v797, 0
        %805 = vmatprep.subr.mxu0 0.0
        %806 = vmatpush1.msra.mxu0 %v800
        %807 = vmatprep.subr.mxu0 0.0
        %808 = vmatpush1.msra.mxu0 0.0
        %809 = vmatprep.subr.mxu0 0.0
        %810 = vmatpush1.msra.mxu0 0.0
        %811 = vmatprep.subr.mxu0 0.0
        %812 = vmatpush1.msra.mxu0 0.0
        %813 = vmatprep.subr.mxu0 0.0
        %814 = vmatpush1.msra.mxu0 0.0
        %815 = vmatprep.subr.mxu0 0.0
        %816 = vmatpush1.msra.mxu0 0.0
        %817 = vmatprep.subr.mxu0 0.0
        %818 = vmatpush1.msra.mxu0 0.0
        %819 = vmatprep.subr.mxu0 0.0
        %820 = vmatpush1.msra.mxu0 0.0
        %821 = vmatprep.subr.mxu0 0.0
        %822 = vmatpush1.msra.mxu0 0.0
        %823 = vmatprep.subr.mxu0 0.0
        %824 = vmatpush1.msra.mxu0 0.0
        %825 = vmatprep.subr.mxu0 0.0
        %826 = vmatpush1.msra.mxu0 0.0
        %827 = vmatprep.subr.mxu0 0.0
        %828 = vmatpush1.msra.mxu0 0.0
        %829 = vmatprep.subr.mxu0 0.0
        %830 = vmatpush1.msra.mxu0 0.0
        %831 = vmatprep.subr.mxu0 0.0
        %832 = vmatpush1.msra.mxu0 0.0
        %833 = vmatprep.subr.mxu0 0.0
        %834 = vmatpush1.msra.mxu0 0.0
        %835 = vmatprep.subr.mxu0 0.0
        %836 = vmatpush1.msra.mxu0 0.0
        %837 = vmatprep.subr.mxu0 0.0
        %838 = vmatpush1.msra.mxu0 0.0
        %839 = vmatprep.subr.mxu0 0.0
        %840 = vmatpush1.msra.mxu0 0.0
        %841 = vmatprep.subr.mxu0 0.0
        %842 = vmatpush1.msra.mxu0 0.0
        %843 = vmatprep.subr.mxu0 0.0
        %844 = vmatpush1.msra.mxu0 0.0
        %845 = vmatprep.subr.mxu0 0.0
        %846 = vmatpush1.msra.mxu0 0.0
        %847 = vmatprep.subr.mxu0 0.0
        %848 = vmatpush1.msra.mxu0 0.0
        %849 = vmatprep.subr.mxu0 0.0
        %850 = vmatpush1.msra.mxu0 0.0
        %851 = vmatprep.subr.mxu0 0.0
        %852 = vmatpush1.msra.mxu0 0.0
        %853 = vmatprep.subr.mxu0 0.0
        %854 = vmatpush1.msra.mxu0 0.0
        %855 = vmatprep.subr.mxu0 0.0
        %856 = vmatpush1.msra.mxu0 0.0
        %857 = vmatprep.subr.mxu0 0.0
        %858 = vmatpush1.msra.mxu0 0.0
        %859 = vmatprep.subr.mxu0 0.0
        %860 = vmatpush1.msra.mxu0 0.0
        %861 = vmatprep.subr.mxu0 0.0
        %862 = vmatpush1.msra.mxu0 0.0
        %863 = vmatprep.subr.mxu0 0.0
        %864 = vmatpush1.msra.mxu0 0.0
        %865 = vmatprep.subr.mxu0 0.0
        %866 = vmatpush1.msra.mxu0 0.0
        %867 = vmatprep.subr.mxu0 0.0
        %868 = vmatpush1.msra.mxu0 0.0
        %869 = vmatprep.mubr.f32.mxu0 0.0
        %870 = vmatmul.mubr.f32.gmra.mrb[0].mxu0 %v803
        %v871 = vpop.f32.mrb[0].mxu0
        %v872 = vadd.f32 0.0, %v871
        %v873 = vpop.f32.mrb[0].mxu0
        %874 = vdwg.mxu0
        %876 = vrot.lane.b32.xlu0 %v872, 32
        %v877 = vpop.permute.xlu0 %876
        %vm879 = vcmask 523520
        %880 = vst.msk [vmem:[#allocation2] sm:$0xff] %vm879, %v877
        %881 = vrot.lane.b32.xlu0 %v480, 64
        %v882 = vpop.permute.xlu0 %881
        %883 = vrot.lane.b32.xlu0 %v482, 64
        %v884 = vpop.permute.xlu0 %883
        %v885 = vsel %vm540, %v882, 0
        %v887 = vsel %vm540, %v884, 0
        %889 = vmatprep.subr.mxu0 0.0
        %890 = vmatpush1.xpose.msra.mxu0 %v887
        %891 = vmatprep.subr.mxu0 0.0
        %892 = vmatpush1.xpose.msra.mxu0 0.0
        %893 = vmatprep.subr.mxu0 0.0
        %894 = vmatpush1.xpose.msra.mxu0 0.0
        %895 = vmatprep.subr.mxu0 0.0
        %896 = vmatpush1.xpose.msra.mxu0 0.0
        %897 = vmatprep.subr.mxu0 0.0
        %898 = vmatpush1.xpose.msra.mxu0 0.0
        %899 = vmatprep.subr.mxu0 0.0
        %900 = vmatpush1.xpose.msra.mxu0 0.0
        %901 = vmatprep.subr.mxu0 0.0
        %902 = vmatpush1.xpose.msra.mxu0 0.0
        %903 = vmatprep.subr.mxu0 0.0
        %904 = vmatpush1.xpose.msra.mxu0 0.0
        %905 = vmatprep.subr.mxu0 0.0
        %906 = vmatpush1.xpose.msra.mxu0 0.0
        %907 = vmatprep.subr.mxu0 0.0
        %908 = vmatpush1.xpose.msra.mxu0 0.0
        %909 = vmatprep.subr.mxu0 0.0
        %910 = vmatpush1.xpose.msra.mxu0 0.0
        %911 = vmatprep.subr.mxu0 0.0
        %912 = vmatpush1.xpose.msra.mxu0 0.0
        %913 = vmatprep.subr.mxu0 0.0
        %914 = vmatpush1.xpose.msra.mxu0 0.0
        %915 = vmatprep.subr.mxu0 0.0
        %916 = vmatpush1.xpose.msra.mxu0 0.0
        %917 = vmatprep.subr.mxu0 0.0
        %918 = vmatpush1.xpose.msra.mxu0 0.0
        %919 = vmatprep.subr.mxu0 0.0
        %920 = vmatpush1.xpose.msra.mxu0 0.0
        %921 = vmatprep.subr.mxu0 0.0
        %922 = vmatpush1.xpose.msra.mxu0 0.0
        %923 = vmatprep.subr.mxu0 0.0
        %924 = vmatpush1.xpose.msra.mxu0 0.0
        %925 = vmatprep.subr.mxu0 0.0
        %926 = vmatpush1.xpose.msra.mxu0 0.0
        %927 = vmatprep.subr.mxu0 0.0
        %928 = vmatpush1.xpose.msra.mxu0 0.0
        %929 = vmatprep.subr.mxu0 0.0
        %930 = vmatpush1.xpose.msra.mxu0 0.0
        %931 = vmatprep.subr.mxu0 0.0
        %932 = vmatpush1.xpose.msra.mxu0 0.0
        %933 = vmatprep.subr.mxu0 0.0
        %934 = vmatpush1.xpose.msra.mxu0 0.0
        %935 = vmatprep.subr.mxu0 0.0
        %936 = vmatpush1.xpose.msra.mxu0 0.0
        %937 = vmatprep.subr.mxu0 0.0
        %938 = vmatpush1.xpose.msra.mxu0 0.0
        %939 = vmatprep.subr.mxu0 0.0
        %940 = vmatpush1.xpose.msra.mxu0 0.0
        %941 = vmatprep.subr.mxu0 0.0
        %942 = vmatpush1.xpose.msra.mxu0 0.0
        %943 = vmatprep.subr.mxu0 0.0
        %944 = vmatpush1.xpose.msra.mxu0 0.0
        %945 = vmatprep.subr.mxu0 0.0
        %946 = vmatpush1.xpose.msra.mxu0 0.0
        %947 = vmatprep.subr.mxu0 0.0
        %948 = vmatpush1.xpose.msra.mxu0 0.0
        %949 = vmatprep.subr.mxu0 0.0
        %950 = vmatpush1.xpose.msra.mxu0 0.0
        %951 = vmatprep.subr.mxu0 0.0
        %952 = vmatpush1.xpose.msra.mxu0 0.0
        %953 = vmatprep.mubr.f32.mxu0 0.0
        %954 = vmatmul.mubr.f32.gmra.mrb[0].mxu0 %v885
        %v955 = vpop.f32.mrb[0].mxu0
        %v956 = vadd.f32 %v539, %v955
        %v957 = vpop.f32.mrb[0].mxu0
        %958 = vdwg.mxu0
        %v959 = vsel %vm617, %v956, -inf
        %960 = vmax.xlane.f32.xlu0 %v959
        %v961 = vpop.xlane.xlu0 %960
        %v962 = vsub.f32 %v956, %v961
        %v963 = vmul.f32 %v962, 1.442695
        %v964 = vpow.pop %v963
        %v965 = vsel %vm617, %v964, 0.0
        %966 = vadd.xlane.f32.xlu0 %v965
        %v967 = vpop.xlane.xlu0 %966
        %v968 = vrcp.pop %v967
        %v969 = vmul.f32 %v967, %v968
        %v970 = vsub.f32 2.0, %v969
        %v971 = vmul.f32 %v968, %v970
        %v972 = vmul.f32 %v964, %v971
        %973 = vrot.lane.b32.xlu0 %v521, 64
        %v974 = vpop.permute.xlu0 %973
        %v977 = vsel %vm617, %v972, 0
        %979 = vmatprep.subr.mxu0 0.0
        %980 = vmatpush1.msra.mxu0 %v974
        %981 = vmatprep.subr.mxu0 0.0
        %982 = vmatpush1.msra.mxu0 0.0
        %983 = vmatprep.subr.mxu0 0.0
        %984 = vmatpush1.msra.mxu0 0.0
        %985 = vmatprep.subr.mxu0 0.0
        %986 = vmatpush1.msra.mxu0 0.0
        %987 = vmatprep.subr.mxu0 0.0
        %988 = vmatpush1.msra.mxu0 0.0
        %989 = vmatprep.subr.mxu0 0.0
        %990 = vmatpush1.msra.mxu0 0.0
        %991 = vmatprep.subr.mxu0 0.0
        %992 = vmatpush1.msra.mxu0 0.0
        %993 = vmatprep.subr.mxu0 0.0
        %994 = vmatpush1.msra.mxu0 0.0
        %995 = vmatprep.subr.mxu0 0.0
        %996 = vmatpush1.msra.mxu0 0.0
        %997 = vmatprep.subr.mxu0 0.0
        %998 = vmatpush1.msra.mxu0 0.0
        %999 = vmatprep.subr.mxu0 0.0
        %1000 = vmatpush1.msra.mxu0 0.0
        %1001 = vmatprep.subr.mxu0 0.0
        %1002 = vmatpush1.msra.mxu0 0.0
        %1003 = vmatprep.subr.mxu0 0.0
        %1004 = vmatpush1.msra.mxu0 0.0
        %1005 = vmatprep.subr.mxu0 0.0
        %1006 = vmatpush1.msra.mxu0 0.0
        %1007 = vmatprep.subr.mxu0 0.0
        %1008 = vmatpush1.msra.mxu0 0.0
        %1009 = vmatprep.subr.mxu0 0.0
        %1010 = vmatpush1.msra.mxu0 0.0
        %1011 = vmatprep.subr.mxu0 0.0
        %1012 = vmatpush1.msra.mxu0 0.0
        %1013 = vmatprep.subr.mxu0 0.0
        %1014 = vmatpush1.msra.mxu0 0.0
        %1015 = vmatprep.subr.mxu0 0.0
        %1016 = vmatpush1.msra.mxu0 0.0
        %1017 = vmatprep.subr.mxu0 0.0
        %1018 = vmatpush1.msra.mxu0 0.0
        %1019 = vmatprep.subr.mxu0 0.0
        %1020 = vmatpush1.msra.mxu0 0.0
        %1021 = vmatprep.subr.mxu0 0.0
        %1022 = vmatpush1.msra.mxu0 0.0
        %1023 = vmatprep.subr.mxu0 0.0
        %1024 = vmatpush1.msra.mxu0 0.0
        %1025 = vmatprep.subr.mxu0 0.0
        %1026 = vmatpush1.msra.mxu0 0.0
        %1027 = vmatprep.subr.mxu0 0.0
        %1028 = vmatpush1.msra.mxu0 0.0
        %1029 = vmatprep.subr.mxu0 0.0
        %1030 = vmatpush1.msra.mxu0 0.0
        %1031 = vmatprep.subr.mxu0 0.0
        %1032 = vmatpush1.msra.mxu0 0.0
        %1033 = vmatprep.subr.mxu0 0.0
        %1034 = vmatpush1.msra.mxu0 0.0
        %1035 = vmatprep.subr.mxu0 0.0
        %1036 = vmatpush1.msra.mxu0 0.0
        %1037 = vmatprep.subr.mxu0 0.0
        %1038 = vmatpush1.msra.mxu0 0.0
        %1039 = vmatprep.subr.mxu0 0.0
        %1040 = vmatpush1.msra.mxu0 0.0
        %1041 = vmatprep.subr.mxu0 0.0
        %1042 = vmatpush1.msra.mxu0 0.0
        %1043 = vmatprep.mubr.f32.mxu0 0.0
        %1044 = vmatmul.mubr.f32.gmra.mrb[0].mxu0 %v977
        %v1045 = vpop.f32.mrb[0].mxu0
        %v1046 = vadd.f32 0.0, %v1045
        %v1047 = vpop.f32.mrb[0].mxu0
        %1048 = vdwg.mxu0
        %1050 = vrot.lane.b32.xlu0 %v1046, 64
        %v1051 = vpop.permute.xlu0 %1050
        %vm1053 = vcmask 785920
        %1054 = vst.msk [vmem:[#allocation2] sm:$0xff] %vm1053, %v1051
        %1055 = vrot.lane.b32.xlu0 %v480, 32
        %v1056 = vpop.permute.xlu0 %1055
        %1057 = vrot.lane.b32.xlu0 %v482, 32
        %v1058 = vpop.permute.xlu0 %1057
        %v1059 = vsel %vm540, %v1056, 0
        %v1061 = vsel %vm540, %v1058, 0
        %1063 = vmatprep.subr.mxu0 0.0
        %1064 = vmatpush1.xpose.msra.mxu0 %v1061
        %1065 = vmatprep.subr.mxu0 0.0
        %1066 = vmatpush1.xpose.msra.mxu0 0.0
        %1067 = vmatprep.subr.mxu0 0.0
        %1068 = vmatpush1.xpose.msra.mxu0 0.0
        %1069 = vmatprep.subr.mxu0 0.0
        %1070 = vmatpush1.xpose.msra.mxu0 0.0
        %1071 = vmatprep.subr.mxu0 0.0
        %1072 = vmatpush1.xpose.msra.mxu0 0.0
        %1073 = vmatprep.subr.mxu0 0.0
        %1074 = vmatpush1.xpose.msra.mxu0 0.0
        %1075 = vmatprep.subr.mxu0 0.0
        %1076 = vmatpush1.xpose.msra.mxu0 0.0
        %1077 = vmatprep.subr.mxu0 0.0
        %1078 = vmatpush1.xpose.msra.mxu0 0.0
        %1079 = vmatprep.subr.mxu0 0.0
        %1080 = vmatpush1.xpose.msra.mxu0 0.0
        %1081 = vmatprep.subr.mxu0 0.0
        %1082 = vmatpush1.xpose.msra.mxu0 0.0
        %1083 = vmatprep.subr.mxu0 0.0
        %1084 = vmatpush1.xpose.msra.mxu0 0.0
        %1085 = vmatprep.subr.mxu0 0.0
        %1086 = vmatpush1.xpose.msra.mxu0 0.0
        %1087 = vmatprep.subr.mxu0 0.0
        %1088 = vmatpush1.xpose.msra.mxu0 0.0
        %1089 = vmatprep.subr.mxu0 0.0
        %1090 = vmatpush1.xpose.msra.mxu0 0.0
        %1091 = vmatprep.subr.mxu0 0.0
        %1092 = vmatpush1.xpose.msra.mxu0 0.0
        %1093 = vmatprep.subr.mxu0 0.0
        %1094 = vmatpush1.xpose.msra.mxu0 0.0
        %1095 = vmatprep.subr.mxu0 0.0
        %1096 = vmatpush1.xpose.msra.mxu0 0.0
        %1097 = vmatprep.subr.mxu0 0.0
        %1098 = vmatpush1.xpose.msra.mxu0 0.0
        %1099 = vmatprep.subr.mxu0 0.0
        %1100 = vmatpush1.xpose.msra.mxu0 0.0
        %1101 = vmatprep.subr.mxu0 0.0
        %1102 = vmatpush1.xpose.msra.mxu0 0.0
        %1103 = vmatprep.subr.mxu0 0.0
        %1104 = vmatpush1.xpose.msra.mxu0 0.0
        %1105 = vmatprep.subr.mxu0 0.0
        %1106 = vmatpush1.xpose.msra.mxu0 0.0
        %1107 = vmatprep.subr.mxu0 0.0
        %1108 = vmatpush1.xpose.msra.mxu0 0.0
        %1109 = vmatprep.subr.mxu0 0.0
        %1110 = vmatpush1.xpose.msra.mxu0 0.0
        %1111 = vmatprep.subr.mxu0 0.0
        %1112 = vmatpush1.xpose.msra.mxu0 0.0
        %1113 = vmatprep.subr.mxu0 0.0
        %1114 = vmatpush1.xpose.msra.mxu0 0.0
        %1115 = vmatprep.subr.mxu0 0.0
        %1116 = vmatpush1.xpose.msra.mxu0 0.0
        %1117 = vmatprep.subr.mxu0 0.0
        %1118 = vmatpush1.xpose.msra.mxu0 0.0
        %1119 = vmatprep.subr.mxu0 0.0
        %1120 = vmatpush1.xpose.msra.mxu0 0.0
        %1121 = vmatprep.subr.mxu0 0.0
        %1122 = vmatpush1.xpose.msra.mxu0 0.0
        %1123 = vmatprep.subr.mxu0 0.0
        %1124 = vmatpush1.xpose.msra.mxu0 0.0
        %1125 = vmatprep.subr.mxu0 0.0
        %1126 = vmatpush1.xpose.msra.mxu0 0.0
        %1127 = vmatprep.mubr.f32.mxu0 0.0
        %1128 = vmatmul.mubr.f32.gmra.mrb[0].mxu0 %v1059
        %v1129 = vpop.f32.mrb[0].mxu0
        %v1130 = vadd.f32 %v539, %v1129
        %v1131 = vpop.f32.mrb[0].mxu0
        %1132 = vdwg.mxu0
        %v1133 = vsel %vm617, %v1130, -inf
        %1134 = vmax.xlane.f32.xlu0 %v1133
        %v1135 = vpop.xlane.xlu0 %1134
        %v1136 = vsub.f32 %v1130, %v1135
        %v1137 = vmul.f32 %v1136, 1.442695
        %v1138 = vpow.pop %v1137
        %v1139 = vsel %vm617, %v1138, 0.0
        %1140 = vadd.xlane.f32.xlu0 %v1139
        %v1141 = vpop.xlane.xlu0 %1140
        %v1142 = vrcp.pop %v1141
        %v1143 = vmul.f32 %v1141, %v1142
        %v1144 = vsub.f32 2.0, %v1143
        %v1145 = vmul.f32 %v1142, %v1144
        %v1146 = vmul.f32 %v1138, %v1145
        %1147 = vrot.lane.b32.xlu0 %v521, 32
        %v1148 = vpop.permute.xlu0 %1147
        %v1151 = vsel %vm617, %v1146, 0
        %1153 = vmatprep.subr.mxu0 0.0
        %1154 = vmatpush1.msra.mxu0 %v1148
        %1155 = vmatprep.subr.mxu0 0.0
        %1156 = vmatpush1.msra.mxu0 0.0
        %1157 = vmatprep.subr.mxu0 0.0
        %1158 = vmatpush1.msra.mxu0 0.0
        %1159 = vmatprep.subr.mxu0 0.0
        %1160 = vmatpush1.msra.mxu0 0.0
        %1161 = vmatprep.subr.mxu0 0.0
        %1162 = vmatpush1.msra.mxu0 0.0
        %1163 = vmatprep.subr.mxu0 0.0
        %1164 = vmatpush1.msra.mxu0 0.0
        %1165 = vmatprep.subr.mxu0 0.0
        %1166 = vmatpush1.msra.mxu0 0.0
        %1167 = vmatprep.subr.mxu0 0.0
        %1168 = vmatpush1.msra.mxu0 0.0
        %1169 = vmatprep.subr.mxu0 0.0
        %1170 = vmatpush1.msra.mxu0 0.0
        %1171 = vmatprep.subr.mxu0 0.0
        %1172 = vmatpush1.msra.mxu0 0.0
        %1173 = vmatprep.subr.mxu0 0.0
        %1174 = vmatpush1.msra.mxu0 0.0
        %1175 = vmatprep.subr.mxu0 0.0
        %1176 = vmatpush1.msra.mxu0 0.0
        %1177 = vmatprep.subr.mxu0 0.0
        %1178 = vmatpush1.msra.mxu0 0.0
        %1179 = vmatprep.subr.mxu0 0.0
        %1180 = vmatpush1.msra.mxu0 0.0
        %1181 = vmatprep.subr.mxu0 0.0
        %1182 = vmatpush1.msra.mxu0 0.0
        %1183 = vmatprep.subr.mxu0 0.0
        %1184 = vmatpush1.msra.mxu0 0.0
        %1185 = vmatprep.subr.mxu0 0.0
        %1186 = vmatpush1.msra.mxu0 0.0
        %1187 = vmatprep.subr.mxu0 0.0
        %1188 = vmatpush1.msra.mxu0 0.0
        %1189 = vmatprep.subr.mxu0 0.0
        %1190 = vmatpush1.msra.mxu0 0.0
        %1191 = vmatprep.subr.mxu0 0.0
        %1192 = vmatpush1.msra.mxu0 0.0
        %1193 = vmatprep.subr.mxu0 0.0
        %1194 = vmatpush1.msra.mxu0 0.0
        %1195 = vmatprep.subr.mxu0 0.0
        %1196 = vmatpush1.msra.mxu0 0.0
        %1197 = vmatprep.subr.mxu0 0.0
        %1198 = vmatpush1.msra.mxu0 0.0
        %1199 = vmatprep.subr.mxu0 0.0
        %1200 = vmatpush1.msra.mxu0 0.0
        %1201 = vmatprep.subr.mxu0 0.0
        %1202 = vmatpush1.msra.mxu0 0.0
        %1203 = vmatprep.subr.mxu0 0.0
        %1204 = vmatpush1.msra.mxu0 0.0
        %1205 = vmatprep.subr.mxu0 0.0
        %1206 = vmatpush1.msra.mxu0 0.0
        %1207 = vmatprep.subr.mxu0 0.0
        %1208 = vmatpush1.msra.mxu0 0.0
        %1209 = vmatprep.subr.mxu0 0.0
        %1210 = vmatpush1.msra.mxu0 0.0
        %1211 = vmatprep.subr.mxu0 0.0
        %1212 = vmatpush1.msra.mxu0 0.0
        %1213 = vmatprep.subr.mxu0 0.0
        %1214 = vmatpush1.msra.mxu0 0.0
        %1215 = vmatprep.subr.mxu0 0.0
        %1216 = vmatpush1.msra.mxu0 0.0
        %1217 = vmatprep.mubr.f32.mxu0 0.0
        %1218 = vmatmul.mubr.f32.gmra.mrb[0].mxu0 %v1151
        %v1219 = vpop.f32.mrb[0].mxu0
        %v1220 = vadd.f32 0.0, %v1219
        %v1221 = vpop.f32.mrb[0].mxu0
        %1222 = vdwg.mxu0
        %1224 = vrot.lane.b32.xlu0 %v1220, 96
        %v1225 = vpop.permute.xlu0 %1224
        %vm1227 = vcmask 1048320
        %1228 = vst.msk [vmem:[#allocation2] sm:$0xff] %vm1227, %v1225
        %v1229 = vld [vmem:[#allocation2] sm:$0xff]
        %v1230 = vpack.c.bf16 %v1229, %v1229
        %v1231 = vld [vmem:[#allocation8] sm:$0xf]
        %v1232 = vld [vmem:[#allocation8 + $0x4] sm:$0xf]
        %v1233 = vld [vmem:[#allocation8 + $0x8] sm:$0xf]
        %v1234 = vld [vmem:[#allocation8 + $0xc] sm:$0xf]
        %v1235 = vld [vmem:[#allocation8 + $0x10] sm:$0xf]
        %v1236 = vld [vmem:[#allocation8 + $0x14] sm:$0xf]
        %v1237 = vld [vmem:[#allocation8 + $0x18] sm:$0xf]
        %v1238 = vld [vmem:[#allocation8 + $0x1c] sm:$0xf]
        %v1239 = vld [vmem:[#allocation8 + $0x20] sm:$0xf]
        %v1240 = vld [vmem:[#allocation8 + $0x24] sm:$0xf]
        %v1241 = vld [vmem:[#allocation8 + $0x28] sm:$0xf]
        %v1242 = vld [vmem:[#allocation8 + $0x2c] sm:$0xf]
        %v1243 = vld [vmem:[#allocation8 + $0x30] sm:$0xf]
        %v1244 = vld [vmem:[#allocation8 + $0x34] sm:$0xf]
        %v1245 = vld [vmem:[#allocation8 + $0x38] sm:$0xf]
        %v1246 = vld [vmem:[#allocation8 + $0x3c] sm:$0xf]
        %v1247 = vld [vmem:[%s3] sm:$0x1]
        %v1249 = vlaneseq
        %v1250 = vshrl.u32 %v1249, 7
        %v1251 = vsub.s32 0, %v1250
        %v1252 = vrot.slane %v1247, %v1251
        %v1270 = vunpack.c.l.b16 %v1231
        %v1271 = vunpack.c.l.b16 %v1232
        %v1272 = vunpack.c.l.b16 %v1233
        %v1273 = vunpack.c.l.b16 %v1234
        %v1274 = vunpack.c.l.b16 %v1235
        %v1275 = vunpack.c.l.b16 %v1236
        %v1276 = vunpack.c.l.b16 %v1237
        %v1277 = vunpack.c.l.b16 %v1238
        %v1278 = vunpack.c.l.b16 %v1239
        %v1279 = vunpack.c.l.b16 %v1240
        %v1280 = vunpack.c.l.b16 %v1241
        %v1281 = vunpack.c.l.b16 %v1242
        %v1282 = vunpack.c.l.b16 %v1243
        %v1283 = vunpack.c.l.b16 %v1244
        %v1284 = vunpack.c.l.b16 %v1245
        %v1285 = vunpack.c.l.b16 %v1246
        %v1286 = vpack.c.b16 %v1271, %v1270
        %v1287 = vpack.c.b16 %v1273, %v1272
        %v1288 = vpack.c.b16 %v1275, %v1274
        %v1289 = vpack.c.b16 %v1277, %v1276
        %v1290 = vpack.c.b16 %v1279, %v1278
        %v1291 = vpack.c.b16 %v1281, %v1280
        %v1292 = vpack.c.b16 %v1283, %v1282
        %v1293 = vpack.c.b16 %v1285, %v1284
        %1302 = vmatprep.subr.bf16.mxu0 0
        %1303 = vmatpush1.bf16.msra.mxu0 %v1286
        %1304 = vmatprep.subr.bf16.mxu0 0
        %1305 = vmatpush1.bf16.msra.mxu0 %v1287
        %1306 = vmatprep.subr.bf16.mxu0 0
        %1307 = vmatpush1.bf16.msra.mxu0 %v1288
        %1308 = vmatprep.subr.bf16.mxu0 0
        %1309 = vmatpush1.bf16.msra.mxu0 %v1289
        %1310 = vmatprep.subr.bf16.mxu0 0
        %1311 = vmatpush1.bf16.msra.mxu0 %v1290
        %1312 = vmatprep.subr.bf16.mxu0 0
        %1313 = vmatpush1.bf16.msra.mxu0 %v1291
        %1314 = vmatprep.subr.bf16.mxu0 0
        %1315 = vmatpush1.bf16.msra.mxu0 %v1292
        %1316 = vmatprep.subr.bf16.mxu0 0
        %1317 = vmatpush1.bf16.msra.mxu0 %v1293
        %1318 = vmatprep.subr.bf16.mxu0 0
        %1319 = vmatpush1.bf16.msra.mxu0 0
        %1320 = vmatprep.subr.bf16.mxu0 0
        %1321 = vmatpush1.bf16.msra.mxu0 0
        %1322 = vmatprep.subr.bf16.mxu0 0
        %1323 = vmatpush1.bf16.msra.mxu0 0
        %1324 = vmatprep.subr.bf16.mxu0 0
        %1325 = vmatpush1.bf16.msra.mxu0 0
        %1326 = vmatprep.subr.bf16.mxu0 0
        %1327 = vmatpush1.bf16.msra.mxu0 0
        %1328 = vmatprep.subr.bf16.mxu0 0
        %1329 = vmatpush1.bf16.msra.mxu0 0
        %1330 = vmatprep.subr.bf16.mxu0 0
        %1331 = vmatpush1.bf16.msra.mxu0 0
        %1332 = vmatprep.subr.bf16.mxu0 0
        %1333 = vmatpush1.bf16.msra.mxu0 0
        %1334 = vmatprep.mubr.bf16.mxu0 0
        %1335 = vmatmul.mubr.bf16.gmra.mrb[0].mxu0 %v1230
        %v1336 = vpop.f32.mrb[0].mxu0
        %v1337 = vadd.f32 %v1252, %v1336
        %v1338 = vpop.f32.mrb[0].mxu0
        %v1339 = vpop.f32.mrb[0].mxu0
        %v1340 = vpop.f32.mrb[0].mxu0
        %1341 = vdwg.mxu0
        %1342 = vst [vmem:[%s279] sm:$0xff] %v1337
        %s1343 = sand.u32 %s146, 1
        %s1344 = scalar_lea.sflag [#allocation5], %s1343
        %s1345 = sand.u32 %s146, 1
        %s1346 = smul.addr %s1345, 8
        %s1347 = scalar_lea.vmem [#allocation9], %s1346
        // Predicated region
        $region53: #{tpu_custom_call.1} parent=39 // pred_check
          %p1348 = pneg %p156
        $region54: #{tpu_custom_call.1} parent=39 // pred_check_branch
          %1350 = sbr.rel (%p1348) target = $region56
        $region55: #{tpu_custom_call.1} parent=39 // pred_region
          %s1352 = ssub.s32 128, 128
          %1353 = vsyncadd %s1344, %s1352
          %s1354 = smul.addr %s23, 128
          %s1355 = scalar_lea.hbm %s5, %s1354
          %s1357 = sshll.u32 %s1347, 4
          %s1358 = int_to_ptr.vmem [resolvable:$true] %s1357
          %1360 = dma.vmem_to_hbm [thread:$0]  %s1358, 128, %s1355, %s1344
        $region56: #{tpu_custom_call.1} parent=39 // pred_fallthru
          _
      $region40: #{tpu_custom_call.1} parent=5 // pred_fallthru
        _
      %p1361 = scmp.le.s32.totalorder 2, %s18
      // Predicated region
      $region57: #{tpu_custom_call.1} parent=5 // pred_check
        %p1362 = pneg %p1361
      $region58: #{tpu_custom_call.1} parent=5 // pred_check_branch
        %1364 = sbr.rel (%p1362) target = $region60
      $region59: #{tpu_custom_call.1} parent=5 // pred_region
        %s1365 = ssub.s32 %s18, 2
        // Predicated region
        $region61: #{tpu_custom_call.1} parent=59 // pred_check
          %p1366 = pneg %p162
        $region62: #{tpu_custom_call.1} parent=59 // pred_check_branch
          %1368 = sbr.rel (%p1366) target = $region64
        $region63: #{tpu_custom_call.1} parent=59 // pred_region
          %s1369 = sand.u32 %s147, 1
          %s1370 = scalar_lea.sflag [#allocation5], %s1369
          %s1371 = sand.u32 %s147, 1
          %s1372 = smul.addr %s1371, 8
          %s1373 = scalar_lea.vmem [#allocation9], %s1372
          %1374 = dma.done %s1370, 128
        $region64: #{tpu_custom_call.1} parent=59 // pred_fallthru
          _
      $region60: #{tpu_custom_call.1} parent=5 // pred_fallthru
        _
    $region6: #{tpu_custom_call.1} parent=1 // loop_footer
      %s22 = sadd.s32 1, %s18
    $region7: #{tpu_custom_call.1} parent=1 // loop_footer_branch
      %17 = sbr.rel target = $region3
    $region8: #{tpu_custom_call.1} parent=1 // loop_exit
      _
    %1375 = vsyncpa [#allocation4], 1
    %s1376 = scalar_lea.sflag [#allocation4], 1
    %1377 = vsyncpa %s1376, 1
    %1378 = vsyncpa [#allocation7], 1
    %1379 = vsyncpa [#allocation5], 1
    %s1380 = scalar_lea.sflag [#allocation5], 1
    %1381 = vsyncpa %s1380, 1

</llo_original>
